<compile_context>
chip_gen: v7x
topology: tpu7x:2x2x1
jax: 0.10.0
libtpu: 0.0.40
codegen_flags: <defaults>
</compile_context>

<pallas_src>
import jax
import jax.numpy as jnp
from jax.experimental import pallas as pl
from jax.experimental.pallas import tpu as pltpu

NUM_HEADS = 8
OUT_W = 8          # fc output padded 6 -> 8 lanes; sliced back to 6 outside the kernel
HEAD_PAD = 128     # head axis of score/softmax intermediates padded to a full lane width


def _motion_kernel(img_ref, patch_ref,
                   wq_ref, bq_ref,
                   wk_ref, bk_ref,
                   wv_ref, bv_ref,
                   wo_ref, bo_ref,
                   wfc_ref, bfc_ref,
                   sel_ref, selt_ref,
                   out_ref):
    bt, E = img_ref.shape              # batch tile, embedding dim
    bs = patch_ref.shape[0]            # bt * S (flattened key/value rows of this tile)
    S = bs // bt
    Hp = sel_ref.shape[1]              # lane-padded head axis (128)

    x = img_ref[...]                   # (bt, E)    bf16 query embeddings
    p = patch_ref[...]                 # (bt*S, E)  bf16 key/value embeddings

    # ---- Projections: bf16 inputs/weights, f32 accumulation on the MXU ----
    q = jnp.dot(x, wq_ref[...], preferred_element_type=jnp.float32) + bq_ref[...]   # (bt, E)
    k = jnp.dot(p, wk_ref[...], preferred_element_type=jnp.float32) + bk_ref[...]   # (bt*S, E)
    v = jnp.dot(p, wv_ref[...], preferred_element_type=jnp.float32) + bv_ref[...]   # (bt*S, E)

    # ---- Per-head scores for the single query token of each batch element ----
    # scores[b*S+s, h] = (1/sqrt(hd)) * sum_{e in head h} k[b,s,e] * q[b,e]
    # (scale folded into sel by the wrapper; columns >= NUM_HEADS of sel are zero)
    q_rep = jnp.broadcast_to(q[:, None, :], (bt, S, E)).reshape(bs, E)               # (bt*S, E)
    scores = jnp.dot(k * q_rep, sel_ref[...], preferred_element_type=jnp.float32)    # (bt*S, Hp)
    scores3 = scores.reshape(bt, S, Hp)

    # ---- Softmax over the key axis S (per batch element, per head) ----
    m = jnp.max(scores3, axis=1, keepdims=True)                                      # (bt, 1, Hp)
    ex = jnp.exp(scores3 - m)                                                        # (bt, S, Hp)
    denom = jnp.sum(ex, axis=1, keepdims=True)                                       # (bt, 1, Hp)
    attn = ex * pl.reciprocal(denom, approx=True)                                    # (bt, S, Hp)

    # ---- Context: expand attention back to feature width, reduce over keys ----
    # (zero rows of sel^T for padded heads kill their uniform-softmax values)
    attn_e = jnp.dot(attn.reshape(bs, Hp), selt_ref[...],
                     preferred_element_type=jnp.float32)                             # (bt*S, E)
    ctx = jnp.sum((attn_e * v).reshape(bt, S, E), axis=1)                            # (bt, E)
    # NOTE: if a bundle profile ever shows the 2 XLUs saturated by these sublane
    # reductions, convert the ctx reduction into an MXU matmul (block-ones matrix).

    # ---- Attention output projection + final fc (bf16 weights, f32 accumulate) ----
    o = jnp.dot(ctx.astype(wo_ref.dtype), wo_ref[...],
                preferred_element_type=jnp.float32) + bo_ref[...]                    # (bt, E)
    y = jnp.dot(o.astype(wfc_ref.dtype), wfc_ref[...],
                preferred_element_type=jnp.float32) + bfc_ref[...]                   # (bt, OUT_W)
    out_ref[...] = y.astype(out_ref.dtype)


def _tpu_generation():
    """Best-effort TPU generation detection; unknown -> conservative settings."""
    try:
        kind = jax.devices()[0].device_kind.lower()
    except Exception:
        return "unknown"
    if "v5 lite" in kind or "v5e" in kind or "v5lite" in kind:
        return "v5e"
    if "v6" in kind:
        return "v6e"
    if "v7" in kind or "7x" in kind:
        return "v7x"
    return "unknown"


def _pick_b_tile(B, S, E, gen):
    """Byte-targeted batch tile.

    Binding constraint: live set of lane-padded f32 intermediates (~8 buffers of
    (b_tile*S, round_up(E,128))) plus double-buffered bf16 input slabs, per step.
    v5e/v6e: single TensorCore -> no minimum step count, big VMEM budget.
    v7x: two TensorCores, 64 MiB VMEM -> smaller budget, >= 2 grid steps.
    """
    up8 = lambda n: -(-n // 8) * 8
    Ep = -(-E // 128) * 128
    per_b = (8 * S * Ep * 4                 # live lane-padded f32 intermediates
             + 2 * S * E * 2 + 2 * E * 2)   # double-buffered bf16 activation blocks
    budgets = {"v5e": 56 << 20, "v6e": 56 << 20, "v7x": 20 << 20}
    budget = budgets.get(gen, 16 << 20)
    tile = max(8, (budget // max(per_b, 1)) // 8 * 8)
    b_pad = up8(B)
    tile = min(tile, b_pad)
    if gen == "v7x" and b_pad >= 16:
        tile = min(tile, up8(-(-b_pad // 2)))   # keep >= 2 grid steps (2 TensorCores)
    return max(8, tile)


def motion_estimator_forward(image_embs, patch_embs, params, *, b_tile=None):
    """image_embs: (B, E) f32, patch_embs: (B, S, E) f32 -> (B, 6) f32."""
    B, E = image_embs.shape
    S = patch_embs.shape[1]
    H = NUM_HEADS
    assert E % H == 0, f"dim_emb={E} must be divisible by num_heads={H}"
    hd = E // H
    scale = 1.0 / float(hd) ** 0.5

    gen = _tpu_generation()
    if b_tile is None:
        b_tile = _pick_b_tile(B, S, E, gen)
    b_tile = max(8, ((b_tile + 7) // 8) * 8)

    # Pad batch to a whole number of tiles; on v7x keep the step count EVEN so both
    # TensorCores get work. Zero-padded rows give finite softmax inputs (scores come
    # only from zero embeddings + biases) and are sliced off after the call.
    steps = pl.cdiv(B, b_tile)
    if gen == "v7x" and steps > 1 and steps % 2 == 1:
        steps += 1
    Bp = steps * b_tile
    if Bp != B:
        image_embs = jnp.pad(image_embs, ((0, Bp - B), (0, 0)))
        patch_embs = jnp.pad(patch_embs, ((0, Bp - B), (0, 0), (0, 0)))

    # bf16 streaming activations (halves HBM bytes); accumulation stays f32 in-kernel.
    img_bf = image_embs.astype(jnp.bfloat16)
    patch_flat = patch_embs.astype(jnp.bfloat16).reshape(Bp * S, E)

    # ---- Weight prep (PyTorch Linear stores (out, in); kernel wants (in, out)) ----
    bf = jnp.bfloat16
    wq_t = params["wq"].T.astype(bf)                                    # (E, E)
    wk_t = params["wk"].T.astype(bf)                                    # (E, E)
    wv_t = params["wv"].T.astype(bf)                                    # (E, E)
    wo_t = params["wo"].T.astype(bf)                                    # (E, E)
    wfc_pad = jnp.zeros((E, OUT_W), bf).at[:, :6].set(params["wfc"].T.astype(bf))
    bq = params["bq"].reshape(1, E).astype(jnp.float32)
    bk = params["bk"].reshape(1, E).astype(jnp.float32)
    bv = params["bv"].reshape(1, E).astype(jnp.float32)
    bo = params["bo"].reshape(1, E).astype(jnp.float32)
    bfc_pad = jnp.zeros((1, OUT_W), jnp.float32).at[:, :6].set(params["bfc"])

    # Head-selection matrices, lane-padded to 128 (scale folded into sel). Columns of
    # sel beyond NUM_HEADS and rows of sel_t beyond NUM_HEADS are zero.
    e_ids = jnp.arange(E) // hd                      # values in [0, H)
    h_ids = jnp.arange(HEAD_PAD)
    sel = (e_ids[:, None] == h_ids[None, :]).astype(jnp.float32) * scale   # (E, 128)
    sel_t = (h_ids[:, None] == e_ids[None, :]).astype(jnp.float32)          # (128, E)

    # ---- VMEM budget (re-derived: track the real lane-padded live set) ----
    resident_bytes = ((4 * E * E + E * OUT_W) * 2    # bf16 projection weights
                      + (4 * E + OUT_W) * 4          # f32 biases
                      + 2 * E * HEAD_PAD * 4)        # f32 sel / sel_t
    single_buf_weights = (gen == "v7x") and resident_bytes > (4 << 20)
    n_wbuf = 1 if single_buf_weights else 2

    Ep = -(-E // 128) * 128
    est_bytes = (
        2 * (b_tile * E + b_tile * S * E) * 2        # double-buffered bf16 activation blocks
        + 2 * b_tile * OUT_W * 4                     # double-buffered f32 output block
        + n_wbuf * resident_bytes                    # resident weights / biases / sel
        + 8 * b_tile * S * Ep * 4                    # live lane-padded f32 intermediates
        + (1 << 20)                                  # compiler-temporary slack
    )
    caps = {"v5e": 100 << 20, "v6e": 100 << 20, "v7x": 48 << 20}
    vmem_limit = int(min(max(int(est_bytes * 1.25), 4 << 20), caps.get(gen, 32 << 20)))

    rep = lambda b: (0, 0)   # resident across all batch tiles: DMA'd on step 0 only
    wmode = {"pipeline_mode": pl.Buffered(1)} if single_buf_weights else {}

    out_pad = pl.pallas_call(
        _motion_kernel,
        out_shape=jax.ShapeDtypeStruct((Bp, OUT_W), jnp.float32),
        grid=(Bp // b_tile,),
        in_specs=[
            pl.BlockSpec((b_tile, E), lambda b: (b, 0)),        # image_embs tile (bf16)
            pl.BlockSpec((b_tile * S, E), lambda b: (b, 0)),    # patch_embs tile (bf16, flat)
            pl.BlockSpec((E, E), rep, **wmode),                 # Wq^T
            pl.BlockSpec((1, E), rep, **wmode),                 # bq
            pl.BlockSpec((E, E), rep, **wmode),                 # Wk^T
            pl.BlockSpec((1, E), rep, **wmode),                 # bk
            pl.BlockSpec((E, E), rep, **wmode),                 # Wv^T
            pl.BlockSpec((1, E), rep, **wmode),                 # bv
            pl.BlockSpec((E, E), rep, **wmode),                 # Wo^T
            pl.BlockSpec((1, E), rep, **wmode),                 # bo
            pl.BlockSpec((E, OUT_W), rep, **wmode),             # Wfc^T (padded to 8 cols)
            pl.BlockSpec((1, OUT_W), rep, **wmode),             # bfc   (padded to 8 cols)
            pl.BlockSpec((E, HEAD_PAD), rep, **wmode),          # sel   (scaled, lane-padded)
            pl.BlockSpec((HEAD_PAD, E), rep, **wmode),          # sel^T (lane-padded)
        ],
        out_specs=pl.BlockSpec((b_tile, OUT_W), lambda b: (b, 0)),
        compiler_params=pltpu.CompilerParams(
            dimension_semantics=("parallel",),
            vmem_limit_bytes=vmem_limit),
    )(img_bf, patch_flat, wq_t, bq, wk_t, bk, wv_t, bv, wo_t, bo,
      wfc_pad, bfc_pad, sel, sel_t)

    return out_pad[:B, :6]


def _reference_forward(image_embs, patch_embs, params):
    """Pure-JAX f32 replica of torch nn.MultiheadAttention (L=1 query) + Linear."""
    B, E = image_embs.shape
    S = patch_embs.shape[1]
    H = NUM_HEADS
    hd = E // H
    q = image_embs @ params["wq"].T + params["bq"]          # (B, E)
    k = patch_embs @ params["wk"].T + params["bk"]          # (B, S, E)
    v = patch_embs @ params["wv"].T + params["bv"]          # (B, S, E)
    qh = q.reshape(B, H, hd)
    kh = k.reshape(B, S, H, hd)
    vh = v.reshape(B, S, H, hd)
    scores = jnp.einsum("bhd,bshd->bhs", qh, kh) / (float(hd) ** 0.5)
    attn = jax.nn.softmax(scores, axis=-1)
    ctx = jnp.einsum("bhs,bshd->bhd", attn, vh).reshape(B, E)
    o = ctx @ params["wo"].T + params["bo"]
    return o @ params["wfc"].T + params["bfc"]


def _init_params(key, dim_emb):
    """Deterministic synthetic parameters matching nn.MultiheadAttention + nn.Linear."""
    ks = jax.random.split(key, 12)
    n = lambda k, shape, s=0.05: (jax.random.normal(k, shape, jnp.float32) * s)
    E = dim_emb
    return {
        "wq": n(ks[0], (E, E)), "wk": n(ks[1], (E, E)), "wv": n(ks[2], (E, E)),
        "bq": n(ks[3], (E,)),   "bk": n(ks[4], (E,)),   "bv": n(ks[5], (E,)),
        "wo": n(ks[6], (E, E)), "bo": n(ks[7], (E,)),
        "wfc": n(ks[8], (6, E)), "bfc": n(ks[9], (6,)),
    }


if __name__ == "__main__":
    # Small shapes consistent with the module: batch=16, patches=8, dim_emb=32 (8 heads).
    B, S, E = 16, 8, 32

    key = jax.random.PRNGKey(0)
    k_img, k_patch, k_param = jax.random.split(key, 3)
    image_embs = jax.random.normal(k_img, (B, E), jnp.float32)
    patch_embs = jax.random.normal(k_patch, (B, S, E), jnp.float32)
    params = _init_params(k_param, E)

    out = jax.block_until_ready(motion_estimator_forward(image_embs, patch_embs, params))
    ref = _reference_forward(image_embs, patch_embs, params)

    assert out.shape == (B, 6), out.shape
    # bf16 inputs/weights + approx reciprocal: errors are ~1e-4 absolute here, well
    # inside the tolerance; set approx=False / keep f32 weights for strict parity.
    assert jnp.allclose(out, ref, atol=1e-3, rtol=1e-3), (out, ref)
    print("KERNEL_OK")
</pallas_src>

<mosaic_0001>
module attributes {stable_mosaic.version = 11 : i64} {
  func.func @_motion_kernel(%arg0: i32, %arg1: memref<16x32xbf16, #tpu.memory_space<vmem>>, %arg2: memref<128x32xbf16, #tpu.memory_space<vmem>>, %arg3: memref<32x32xbf16, #tpu.memory_space<vmem>>, %arg4: memref<1x32xf32, #tpu.memory_space<vmem>>, %arg5: memref<32x32xbf16, #tpu.memory_space<vmem>>, %arg6: memref<1x32xf32, #tpu.memory_space<vmem>>, %arg7: memref<32x32xbf16, #tpu.memory_space<vmem>>, %arg8: memref<1x32xf32, #tpu.memory_space<vmem>>, %arg9: memref<32x32xbf16, #tpu.memory_space<vmem>>, %arg10: memref<1x32xf32, #tpu.memory_space<vmem>>, %arg11: memref<32x8xbf16, #tpu.memory_space<vmem>>, %arg12: memref<1x8xf32, #tpu.memory_space<vmem>>, %arg13: memref<32x128xf32, #tpu.memory_space<vmem>>, %arg14: memref<128x32xf32, #tpu.memory_space<vmem>>, %arg15: memref<16x8xf32, #tpu.memory_space<vmem>>) attributes {dimension_semantics = [#tpu.dimension_semantics<parallel>], iteration_bounds = array<i64: 1>, scalar_prefetch = 0 : i64, scratch_operands = 0 : i64, tpu.core_type = #tpu.core_type<tc>, window_params = [{transform_indices = @transform_0, window_bounds = array<i64: 16, 32>}, {transform_indices = @transform_1, window_bounds = array<i64: 128, 32>}, {pipeline_mode = #tpu.pipeline_mode<synchronous>, transform_indices = @transform_2, window_bounds = array<i64: 32, 32>}, {pipeline_mode = #tpu.pipeline_mode<synchronous>, transform_indices = @transform_3, window_bounds = array<i64: 1, 32>}, {pipeline_mode = #tpu.pipeline_mode<synchronous>, transform_indices = @transform_4, window_bounds = array<i64: 32, 32>}, {pipeline_mode = #tpu.pipeline_mode<synchronous>, transform_indices = @transform_5, window_bounds = array<i64: 1, 32>}, {pipeline_mode = #tpu.pipeline_mode<synchronous>, transform_indices = @transform_6, window_bounds = array<i64: 32, 32>}, {pipeline_mode = #tpu.pipeline_mode<synchronous>, transform_indices = @transform_7, window_bounds = array<i64: 1, 32>}, {pipeline_mode = #tpu.pipeline_mode<synchronous>, transform_indices = @transform_8, window_bounds = array<i64: 32, 32>}, {pipeline_mode = #tpu.pipeline_mode<synchronous>, transform_indices = @transform_9, window_bounds = array<i64: 1, 32>}, {pipeline_mode = #tpu.pipeline_mode<synchronous>, transform_indices = @transform_10, window_bounds = array<i64: 32, 8>}, {pipeline_mode = #tpu.pipeline_mode<synchronous>, transform_indices = @transform_11, window_bounds = array<i64: 1, 8>}, {pipeline_mode = #tpu.pipeline_mode<synchronous>, transform_indices = @transform_12, window_bounds = array<i64: 32, 128>}, {pipeline_mode = #tpu.pipeline_mode<synchronous>, transform_indices = @transform_13, window_bounds = array<i64: 128, 32>}, {transform_indices = @transform_14, window_bounds = array<i64: 16, 8>}]} {
    %c0 = arith.constant 0 : index
    %c0_0 = arith.constant 0 : index
    %0 = vector.load %arg1[%c0, %c0_0] : memref<16x32xbf16, #tpu.memory_space<vmem>>, vector<16x32xbf16>
    %c0_1 = arith.constant 0 : index
    %c0_2 = arith.constant 0 : index
    %1 = vector.load %arg2[%c0_1, %c0_2] : memref<128x32xbf16, #tpu.memory_space<vmem>>, vector<128x32xbf16>
    %c0_3 = arith.constant 0 : index
    %c0_4 = arith.constant 0 : index
    %2 = vector.load %arg3[%c0_3, %c0_4] : memref<32x32xbf16, #tpu.memory_space<vmem>>, vector<32x32xbf16>
    %cst = arith.constant dense<0.000000e+00> : vector<16x32xf32>
    %3 = tpu.matmul %0, %2, %cst {dimension_numbers = #tpu.dot_dimension_numbers<[1], [0], [0], [1], [0, 0, 1, 1], [], []>} : vector<16x32xbf16>, vector<32x32xbf16>, vector<16x32xf32> -> vector<16x32xf32>
    %c0_5 = arith.constant 0 : index
    %c0_6 = arith.constant 0 : index
    %4 = vector.load %arg4[%c0_5, %c0_6] : memref<1x32xf32, #tpu.memory_space<vmem>>, vector<1x32xf32>
    %5 = vector.broadcast %4 : vector<1x32xf32> to vector<16x32xf32>
    %6 = arith.addf %3, %5 : vector<16x32xf32>
    %c0_7 = arith.constant 0 : index
    %c0_8 = arith.constant 0 : index
    %7 = vector.load %arg5[%c0_7, %c0_8] : memref<32x32xbf16, #tpu.memory_space<vmem>>, vector<32x32xbf16>
    %cst_9 = arith.constant dense<0.000000e+00> : vector<128x32xf32>
    %8 = tpu.matmul %1, %7, %cst_9 {dimension_numbers = #tpu.dot_dimension_numbers<[1], [0], [0], [1], [0, 0, 1, 1], [], []>} : vector<128x32xbf16>, vector<32x32xbf16>, vector<128x32xf32> -> vector<128x32xf32>
    %c0_10 = arith.constant 0 : index
    %c0_11 = arith.constant 0 : index
    %9 = vector.load %arg6[%c0_10, %c0_11] : memref<1x32xf32, #tpu.memory_space<vmem>>, vector<1x32xf32>
    %10 = vector.broadcast %9 : vector<1x32xf32> to vector<128x32xf32>
    %11 = arith.addf %8, %10 : vector<128x32xf32>
    %c0_12 = arith.constant 0 : index
    %c0_13 = arith.constant 0 : index
    %12 = vector.load %arg7[%c0_12, %c0_13] : memref<32x32xbf16, #tpu.memory_space<vmem>>, vector<32x32xbf16>
    %cst_14 = arith.constant dense<0.000000e+00> : vector<128x32xf32>
    %13 = tpu.matmul %1, %12, %cst_14 {dimension_numbers = #tpu.dot_dimension_numbers<[1], [0], [0], [1], [0, 0, 1, 1], [], []>} : vector<128x32xbf16>, vector<32x32xbf16>, vector<128x32xf32> -> vector<128x32xf32>
    %c0_15 = arith.constant 0 : index
    %c0_16 = arith.constant 0 : index
    %14 = vector.load %arg8[%c0_15, %c0_16] : memref<1x32xf32, #tpu.memory_space<vmem>>, vector<1x32xf32>
    %15 = vector.broadcast %14 : vector<1x32xf32> to vector<128x32xf32>
    %16 = arith.addf %13, %15 : vector<128x32xf32>
    %17 = vector.shape_cast %6 : vector<16x32xf32> to vector<16x1x32xf32>
    %18 = vector.shape_cast %17 : vector<16x1x32xf32> to vector<16x1x32xf32>
    %19 = vector.broadcast %18 : vector<16x1x32xf32> to vector<16x8x32xf32>
    %20 = vector.shape_cast %19 : vector<16x8x32xf32> to vector<128x32xf32>
    %21 = arith.mulf %11, %20 : vector<128x32xf32>
    %c0_17 = arith.constant 0 : index
    %c0_18 = arith.constant 0 : index
    %22 = vector.load %arg13[%c0_17, %c0_18] : memref<32x128xf32, #tpu.memory_space<vmem>>, vector<32x128xf32>
    %cst_19 = arith.constant dense<0.000000e+00> : vector<128x128xf32>
    %23 = tpu.matmul %21, %22, %cst_19 {dimension_numbers = #tpu.dot_dimension_numbers<[1], [0], [0], [1], [0, 0, 1, 1], [], []>} : vector<128x32xf32>, vector<32x128xf32>, vector<128x128xf32> -> vector<128x128xf32>
    %24 = vector.shape_cast %23 : vector<128x128xf32> to vector<16x8x128xf32>
    %cst_20 = arith.constant dense<0xFF800000> : vector<16x128xf32>
    %25 = vector.multi_reduction <maximumf>, %24, %cst_20 [1] : vector<16x8x128xf32> to vector<16x128xf32>
    %26 = vector.shape_cast %25 : vector<16x128xf32> to vector<16x1x128xf32>
    %27 = vector.broadcast %26 : vector<16x1x128xf32> to vector<16x8x128xf32>
    %28 = arith.subf %24, %27 : vector<16x8x128xf32>
    %29 = math.exp %28 : vector<16x8x128xf32>
    %cst_21 = arith.constant dense<0.000000e+00> : vector<16x128xf32>
    %30 = vector.multi_reduction <add>, %29, %cst_21 [1] : vector<16x8x128xf32> to vector<16x128xf32>
    %31 = vector.shape_cast %30 : vector<16x128xf32> to vector<16x1x128xf32>
    %32 = tpu.reciprocal %31 {approx = true} : vector<16x1x128xf32> -> vector<16x1x128xf32>
    %33 = vector.broadcast %32 : vector<16x1x128xf32> to vector<16x8x128xf32>
    %34 = arith.mulf %29, %33 : vector<16x8x128xf32>
    %35 = vector.shape_cast %34 : vector<16x8x128xf32> to vector<128x128xf32>
    %c0_22 = arith.constant 0 : index
    %c0_23 = arith.constant 0 : index
    %36 = vector.load %arg14[%c0_22, %c0_23] : memref<128x32xf32, #tpu.memory_space<vmem>>, vector<128x32xf32>
    %cst_24 = arith.constant dense<0.000000e+00> : vector<128x32xf32>
    %37 = tpu.matmul %35, %36, %cst_24 {dimension_numbers = #tpu.dot_dimension_numbers<[1], [0], [0], [1], [0, 0, 1, 1], [], []>} : vector<128x128xf32>, vector<128x32xf32>, vector<128x32xf32> -> vector<128x32xf32>
    %38 = arith.mulf %37, %16 : vector<128x32xf32>
    %39 = vector.shape_cast %38 : vector<128x32xf32> to vector<16x8x32xf32>
    %cst_25 = arith.constant dense<0.000000e+00> : vector<16x32xf32>
    %40 = vector.multi_reduction <add>, %39, %cst_25 [1] : vector<16x8x32xf32> to vector<16x32xf32>
    %41 = arith.truncf %40 : vector<16x32xf32> to vector<16x32xbf16>
    %c0_26 = arith.constant 0 : index
    %c0_27 = arith.constant 0 : index
    %42 = vector.load %arg9[%c0_26, %c0_27] : memref<32x32xbf16, #tpu.memory_space<vmem>>, vector<32x32xbf16>
    %cst_28 = arith.constant dense<0.000000e+00> : vector<16x32xf32>
    %43 = tpu.matmul %41, %42, %cst_28 {dimension_numbers = #tpu.dot_dimension_numbers<[1], [0], [0], [1], [0, 0, 1, 1], [], []>} : vector<16x32xbf16>, vector<32x32xbf16>, vector<16x32xf32> -> vector<16x32xf32>
    %c0_29 = arith.constant 0 : index
    %c0_30 = arith.constant 0 : index
    %44 = vector.load %arg10[%c0_29, %c0_30] : memref<1x32xf32, #tpu.memory_space<vmem>>, vector<1x32xf32>
    %45 = vector.broadcast %44 : vector<1x32xf32> to vector<16x32xf32>
    %46 = arith.addf %43, %45 : vector<16x32xf32>
    %47 = arith.truncf %46 : vector<16x32xf32> to vector<16x32xbf16>
    %c0_31 = arith.constant 0 : index
    %c0_32 = arith.constant 0 : index
    %48 = vector.load %arg11[%c0_31, %c0_32] : memref<32x8xbf16, #tpu.memory_space<vmem>>, vector<32x8xbf16>
    %cst_33 = arith.constant dense<0.000000e+00> : vector<16x8xf32>
    %49 = tpu.matmul %47, %48, %cst_33 {dimension_numbers = #tpu.dot_dimension_numbers<[1], [0], [0], [1], [0, 0, 1, 1], [], []>} : vector<16x32xbf16>, vector<32x8xbf16>, vector<16x8xf32> -> vector<16x8xf32>
    %c0_34 = arith.constant 0 : index
    %c0_35 = arith.constant 0 : index
    %50 = vector.load %arg12[%c0_34, %c0_35] : memref<1x8xf32, #tpu.memory_space<vmem>>, vector<1x8xf32>
    %51 = vector.broadcast %50 : vector<1x8xf32> to vector<16x8xf32>
    %52 = arith.addf %49, %51 : vector<16x8xf32>
    %c0_36 = arith.constant 0 : index
    %c0_37 = arith.constant 0 : index
    %53 = vector.load %arg15[%c0_36, %c0_37] : memref<16x8xf32, #tpu.memory_space<vmem>>, vector<16x8xf32>
    tpu.vector_store %arg15[%c0_36, %c0_37], %52 {strides = array<i32>} : memref<16x8xf32, #tpu.memory_space<vmem>>, vector<16x8xf32>,
    return
  }
  func.func @transform_0(%arg0: i32) -> (i32, i32) {
    %c0_i32 = arith.constant 0 : i32
    %c0_i32_0 = arith.constant 0 : i32
    return %arg0, %c0_i32 : i32, i32
  }
  func.func @transform_1(%arg0: i32) -> (i32, i32) {
    %c0_i32 = arith.constant 0 : i32
    %c0_i32_0 = arith.constant 0 : i32
    return %arg0, %c0_i32 : i32, i32
  }
  func.func @transform_2(%arg0: i32) -> (i32, i32) {
    %c0_i32 = arith.constant 0 : i32
    %c0_i32_0 = arith.constant 0 : i32
    %c0_i32_1 = arith.constant 0 : i32
    return %c0_i32, %c0_i32_0 : i32, i32
  }
  func.func @transform_3(%arg0: i32) -> (i32, i32) {
    %c0_i32 = arith.constant 0 : i32
    %c0_i32_0 = arith.constant 0 : i32
    %c0_i32_1 = arith.constant 0 : i32
    return %c0_i32, %c0_i32_0 : i32, i32
  }
  func.func @transform_4(%arg0: i32) -> (i32, i32) {
    %c0_i32 = arith.constant 0 : i32
    %c0_i32_0 = arith.constant 0 : i32
    %c0_i32_1 = arith.constant 0 : i32
    return %c0_i32, %c0_i32_0 : i32, i32
  }
  func.func @transform_5(%arg0: i32) -> (i32, i32) {
    %c0_i32 = arith.constant 0 : i32
    %c0_i32_0 = arith.constant 0 : i32
    %c0_i32_1 = arith.constant 0 : i32
    return %c0_i32, %c0_i32_0 : i32, i32
  }
  func.func @transform_6(%arg0: i32) -> (i32, i32) {
    %c0_i32 = arith.constant 0 : i32
    %c0_i32_0 = arith.constant 0 : i32
    %c0_i32_1 = arith.constant 0 : i32
    return %c0_i32, %c0_i32_0 : i32, i32
  }
  func.func @transform_7(%arg0: i32) -> (i32, i32) {
    %c0_i32 = arith.constant 0 : i32
    %c0_i32_0 = arith.constant 0 : i32
    %c0_i32_1 = arith.constant 0 : i32
    return %c0_i32, %c0_i32_0 : i32, i32
  }
  func.func @transform_8(%arg0: i32) -> (i32, i32) {
    %c0_i32 = arith.constant 0 : i32
    %c0_i32_0 = arith.constant 0 : i32
    %c0_i32_1 = arith.constant 0 : i32
    return %c0_i32, %c0_i32_0 : i32, i32
  }
  func.func @transform_9(%arg0: i32) -> (i32, i32) {
    %c0_i32 = arith.constant 0 : i32
    %c0_i32_0 = arith.constant 0 : i32
    %c0_i32_1 = arith.constant 0 : i32
    return %c0_i32, %c0_i32_0 : i32, i32
  }
  func.func @transform_10(%arg0: i32) -> (i32, i32) {
    %c0_i32 = arith.constant 0 : i32
    %c0_i32_0 = arith.constant 0 : i32
    %c0_i32_1 = arith.constant 0 : i32
    return %c0_i32, %c0_i32_0 : i32, i32
  }
  func.func @transform_11(%arg0: i32) -> (i32, i32) {
    %c0_i32 = arith.constant 0 : i32
    %c0_i32_0 = arith.constant 0 : i32
    %c0_i32_1 = arith.constant 0 : i32
    return %c0_i32, %c0_i32_0 : i32, i32
  }
  func.func @transform_12(%arg0: i32) -> (i32, i32) {
    %c0_i32 = arith.constant 0 : i32
    %c0_i32_0 = arith.constant 0 : i32
    %c0_i32_1 = arith.constant 0 : i32
    return %c0_i32, %c0_i32_0 : i32, i32
  }
  func.func @transform_13(%arg0: i32) -> (i32, i32) {
    %c0_i32 = arith.constant 0 : i32
    %c0_i32_0 = arith.constant 0 : i32
    %c0_i32_1 = arith.constant 0 : i32
    return %c0_i32, %c0_i32_0 : i32, i32
  }
  func.func @transform_14(%arg0: i32) -> (i32, i32) {
    %c0_i32 = arith.constant 0 : i32
    %c0_i32_0 = arith.constant 0 : i32
    return %arg0, %c0_i32 : i32, i32
  }
}

</mosaic_0001>

<llo_original>
// kernel: tpu_custom_call.1
$region0: #{tpu_custom_call.1}
  #allocation0 [shape = 'u32[]', space=smem, size = 0x4, offset = 0x4, fixed_abs, tag = 'smem constant byte address 0x4 - core index']
  #allocation1 [shape = 'u32[144,128]{1,0:T(1,128)}', space=vmem, size = 0x12000, scoped, tag = 'internal scratch']
  %s0 = inlined_call_operand.vmem [shape: bf16[16,32], index: 0, kind: input, shape index: {}]
  %s1 = inlined_call_operand.vmem [shape: bf16[128,32], index: 1, kind: input, shape index: {}]
  %s2 = inlined_call_operand.vmem [shape: bf16[32,32], index: 2, kind: input, shape index: {}]
  %s3 = inlined_call_operand.vmem [shape: f32[1,32], index: 3, kind: input, shape index: {}]
  %s4 = inlined_call_operand.vmem [shape: bf16[32,32], index: 4, kind: input, shape index: {}]
  %s5 = inlined_call_operand.vmem [shape: f32[1,32], index: 5, kind: input, shape index: {}]
  %s6 = inlined_call_operand.vmem [shape: bf16[32,32], index: 6, kind: input, shape index: {}]
  %s7 = inlined_call_operand.vmem [shape: f32[1,32], index: 7, kind: input, shape index: {}]
  %s8 = inlined_call_operand.vmem [shape: bf16[32,32], index: 8, kind: input, shape index: {}]
  %s9 = inlined_call_operand.vmem [shape: f32[1,32], index: 9, kind: input, shape index: {}]
  %s10 = inlined_call_operand.vmem [shape: bf16[32,8], index: 10, kind: input, shape index: {}]
  %s11 = inlined_call_operand.vmem [shape: f32[1,8], index: 11, kind: input, shape index: {}]
  %s12 = inlined_call_operand.vmem [shape: f32[32,128], index: 12, kind: input, shape index: {}]
  %s13 = inlined_call_operand.vmem [shape: f32[128,32], index: 13, kind: input, shape index: {}]
  %s14 = inlined_call_operand.vmem [shape: f32[16,8], index: 14, kind: output, shape index: {}]
  %s15 = sld [smem:[#allocation0]]
  $region66: #{tpu_custom_call.1} parent=0
    _
  %s17 = ssub.s32 1, %s15
  %s18 = scalar_select 0, %s17, %s15
  // Predicated region
  $region2: #{tpu_custom_call.1} parent=0 // pred_check
    _
  $region3: #{tpu_custom_call.1} parent=0 // pred_check_branch
    %20 = sbr.rel (0) target = $region5
  $region4: #{tpu_custom_call.1} parent=0 // pred_region
    _
  $region5: #{tpu_custom_call.1} parent=0 // pred_fallthru
    _
  // Predicated region
  $region6: #{tpu_custom_call.1} parent=0 // pred_check
    _
  $region7: #{tpu_custom_call.1} parent=0 // pred_check_branch
    %22 = sbr.rel (0) target = $region9
  $region8: #{tpu_custom_call.1} parent=0 // pred_region
    _
  $region9: #{tpu_custom_call.1} parent=0 // pred_fallthru
    _
  // Predicated region
  $region10: #{tpu_custom_call.1} parent=0 // pred_check
    _
  $region11: #{tpu_custom_call.1} parent=0 // pred_check_branch
    %24 = sbr.rel (0) target = $region13
  $region12: #{tpu_custom_call.1} parent=0 // pred_region
    _
  $region13: #{tpu_custom_call.1} parent=0 // pred_fallthru
    _
  // Predicated region
  $region14: #{tpu_custom_call.1} parent=0 // pred_check
    _
  $region15: #{tpu_custom_call.1} parent=0 // pred_check_branch
    %26 = sbr.rel (0) target = $region17
  $region16: #{tpu_custom_call.1} parent=0 // pred_region
    _
  $region17: #{tpu_custom_call.1} parent=0 // pred_fallthru
    _
  // Predicated region
  $region18: #{tpu_custom_call.1} parent=0 // pred_check
    _
  $region19: #{tpu_custom_call.1} parent=0 // pred_check_branch
    %28 = sbr.rel (0) target = $region21
  $region20: #{tpu_custom_call.1} parent=0 // pred_region
    _
  $region21: #{tpu_custom_call.1} parent=0 // pred_fallthru
    _
  // Predicated region
  $region22: #{tpu_custom_call.1} parent=0 // pred_check
    _
  $region23: #{tpu_custom_call.1} parent=0 // pred_check_branch
    %30 = sbr.rel (0) target = $region25
  $region24: #{tpu_custom_call.1} parent=0 // pred_region
    _
  $region25: #{tpu_custom_call.1} parent=0 // pred_fallthru
    _
  // Predicated region
  $region26: #{tpu_custom_call.1} parent=0 // pred_check
    _
  $region27: #{tpu_custom_call.1} parent=0 // pred_check_branch
    %32 = sbr.rel (0) target = $region29
  $region28: #{tpu_custom_call.1} parent=0 // pred_region
    _
  $region29: #{tpu_custom_call.1} parent=0 // pred_fallthru
    _
  // Predicated region
  $region30: #{tpu_custom_call.1} parent=0 // pred_check
    _
  $region31: #{tpu_custom_call.1} parent=0 // pred_check_branch
    %34 = sbr.rel (0) target = $region33
  $region32: #{tpu_custom_call.1} parent=0 // pred_region
    _
  $region33: #{tpu_custom_call.1} parent=0 // pred_fallthru
    _
  // Predicated region
  $region34: #{tpu_custom_call.1} parent=0 // pred_check
    _
  $region35: #{tpu_custom_call.1} parent=0 // pred_check_branch
    %36 = sbr.rel (0) target = $region37
  $region36: #{tpu_custom_call.1} parent=0 // pred_region
    _
  $region37: #{tpu_custom_call.1} parent=0 // pred_fallthru
    _
  // Predicated region
  $region38: #{tpu_custom_call.1} parent=0 // pred_check
    _
  $region39: #{tpu_custom_call.1} parent=0 // pred_check_branch
    %38 = sbr.rel (0) target = $region41
  $region40: #{tpu_custom_call.1} parent=0 // pred_region
    _
  $region41: #{tpu_custom_call.1} parent=0 // pred_fallthru
    _
  // Predicated region
  $region42: #{tpu_custom_call.1} parent=0 // pred_check
    _
  $region43: #{tpu_custom_call.1} parent=0 // pred_check_branch
    %40 = sbr.rel (0) target = $region45
  $region44: #{tpu_custom_call.1} parent=0 // pred_region
    _
  $region45: #{tpu_custom_call.1} parent=0 // pred_fallthru
    _
  // Predicated region
  $region46: #{tpu_custom_call.1} parent=0 // pred_check
    _
  $region47: #{tpu_custom_call.1} parent=0 // pred_check_branch
    %42 = sbr.rel (0) target = $region49
  $region48: #{tpu_custom_call.1} parent=0 // pred_region
    _
  $region49: #{tpu_custom_call.1} parent=0 // pred_fallthru
    _
  // Predicated region
  $region50: #{tpu_custom_call.1} parent=0 // pred_check
    _
  $region51: #{tpu_custom_call.1} parent=0 // pred_check_branch
    %44 = sbr.rel (0) target = $region53
  $region52: #{tpu_custom_call.1} parent=0 // pred_region
    _
  $region53: #{tpu_custom_call.1} parent=0 // pred_fallthru
    _
  // Predicated region
  $region54: #{tpu_custom_call.1} parent=0 // pred_check
    _
  $region55: #{tpu_custom_call.1} parent=0 // pred_check_branch
    %46 = sbr.rel (0) target = $region57
  $region56: #{tpu_custom_call.1} parent=0 // pred_region
    _
  $region57: #{tpu_custom_call.1} parent=0 // pred_fallthru
    _
  %v48 = vld [vmem:[%s0] sm:$0xf]
  %v49 = vld [vmem:[%s0 + $0x4] sm:$0xf]
  %v50 = vld [vmem:[%s1] sm:$0xf]
  %v51 = vld [vmem:[%s1 + $0x4] sm:$0xf]
  %v52 = vld [vmem:[%s1 + $0x8] sm:$0xf]
  %v53 = vld [vmem:[%s1 + $0xc] sm:$0xf]
  %v54 = vld [vmem:[%s1 + $0x10] sm:$0xf]
  %v55 = vld [vmem:[%s1 + $0x14] sm:$0xf]
  %v56 = vld [vmem:[%s1 + $0x18] sm:$0xf]
  %v57 = vld [vmem:[%s1 + $0x1c] sm:$0xf]
  %v58 = vld [vmem:[%s1 + $0x20] sm:$0xf]
  %v59 = vld [vmem:[%s1 + $0x24] sm:$0xf]
  %v60 = vld [vmem:[%s1 + $0x28] sm:$0xf]
  %v61 = vld [vmem:[%s1 + $0x2c] sm:$0xf]
  %v62 = vld [vmem:[%s1 + $0x30] sm:$0xf]
  %v63 = vld [vmem:[%s1 + $0x34] sm:$0xf]
  %v64 = vld [vmem:[%s1 + $0x38] sm:$0xf]
  %v65 = vld [vmem:[%s1 + $0x3c] sm:$0xf]
  %v66 = vld [vmem:[%s2] sm:$0xf]
  %v67 = vld [vmem:[%s2 + $0x4] sm:$0xf]
  %v68 = vld [vmem:[%s2 + $0x8] sm:$0xf]
  %v69 = vld [vmem:[%s2 + $0xc] sm:$0xf]
  %v70 = vld [vmem:[%s3] sm:$0x1]
  %v72 = vlaneseq
  %v73 = vshrl.u32 %v72, 7
  %v74 = vsub.s32 0, %v73
  %v75 = vrot.slane %v70, %v74
  %v79 = vunpack.c.l.b16 %v48
  %v80 = vunpack.c.l.b16 %v49
  %v81 = vpack.c.b16 %v80, %v79
  %v86 = vunpack.c.l.b16 %v66
  %v87 = vunpack.c.l.b16 %v67
  %v88 = vunpack.c.l.b16 %v68
  %v89 = vunpack.c.l.b16 %v69
  %v90 = vpack.c.b16 %v87, %v86
  %v91 = vpack.c.b16 %v89, %v88
  %vm94 = vcmask 261120
  %v96 = vsel %vm94, %v81, 0
  %98 = vmatprep.subr.bf16.mxu0 0
  %99 = vmatpush1.bf16.msra.mxu0 %v90
  %100 = vmatprep.subr.bf16.mxu0 0
  %101 = vmatpush1.bf16.msra.mxu0 %v91
  %102 = vmatprep.subr.bf16.mxu0 0
  %103 = vmatpush1.bf16.msra.mxu0 0
  %104 = vmatprep.subr.bf16.mxu0 0
  %105 = vmatpush1.bf16.msra.mxu0 0
  %106 = vmatprep.subr.bf16.mxu0 0
  %107 = vmatpush1.bf16.msra.mxu0 0
  %108 = vmatprep.subr.bf16.mxu0 0
  %109 = vmatpush1.bf16.msra.mxu0 0
  %110 = vmatprep.subr.bf16.mxu0 0
  %111 = vmatpush1.bf16.msra.mxu0 0
  %112 = vmatprep.subr.bf16.mxu0 0
  %113 = vmatpush1.bf16.msra.mxu0 0
  %114 = vmatprep.subr.bf16.mxu0 0
  %115 = vmatpush1.bf16.msra.mxu0 0
  %116 = vmatprep.subr.bf16.mxu0 0
  %117 = vmatpush1.bf16.msra.mxu0 0
  %118 = vmatprep.subr.bf16.mxu0 0
  %119 = vmatpush1.bf16.msra.mxu0 0
  %120 = vmatprep.subr.bf16.mxu0 0
  %121 = vmatpush1.bf16.msra.mxu0 0
  %122 = vmatprep.subr.bf16.mxu0 0
  %123 = vmatpush1.bf16.msra.mxu0 0
  %124 = vmatprep.subr.bf16.mxu0 0
  %125 = vmatpush1.bf16.msra.mxu0 0
  %126 = vmatprep.subr.bf16.mxu0 0
  %127 = vmatpush1.bf16.msra.mxu0 0
  %128 = vmatprep.subr.bf16.mxu0 0
  %129 = vmatpush1.bf16.msra.mxu0 0
  %130 = vmatprep.mubr.bf16.mxu0 0
  %131 = vmatmul.mubr.bf16.gmra.mrb[0].mxu0 %v96
  %v132 = vpop.f32.mrb[0].mxu0
  %v133 = vadd.f32 %v75, %v132
  %v134 = vpop.f32.mrb[0].mxu0
  %v135 = vpop.f32.mrb[0].mxu0
  %v136 = vadd.f32 %v75, %v135
  %v137 = vpop.f32.mrb[0].mxu0
  %138 = vdwg.mxu0
  %v139 = vld [vmem:[%s4] sm:$0xf]
  %v140 = vld [vmem:[%s4 + $0x4] sm:$0xf]
  %v141 = vld [vmem:[%s4 + $0x8] sm:$0xf]
  %v142 = vld [vmem:[%s4 + $0xc] sm:$0xf]
  %v143 = vld [vmem:[%s5] sm:$0x1]
  %v145 = vlaneseq
  %v146 = vshrl.u32 %v145, 7
  %v147 = vsub.s32 0, %v146
  %v148 = vrot.slane %v143, %v147
  %v166 = vunpack.c.l.b16 %v50
  %v167 = vunpack.c.l.b16 %v51
  %v168 = vunpack.c.l.b16 %v52
  %v169 = vunpack.c.l.b16 %v53
  %v170 = vunpack.c.l.b16 %v54
  %v171 = vunpack.c.l.b16 %v55
  %v172 = vunpack.c.l.b16 %v56
  %v173 = vunpack.c.l.b16 %v57
  %v174 = vunpack.c.l.b16 %v58
  %v175 = vunpack.c.l.b16 %v59
  %v176 = vunpack.c.l.b16 %v60
  %v177 = vunpack.c.l.b16 %v61
  %v178 = vunpack.c.l.b16 %v62
  %v179 = vunpack.c.l.b16 %v63
  %v180 = vunpack.c.l.b16 %v64
  %v181 = vunpack.c.l.b16 %v65
  %v182 = vpack.c.b16 %v167, %v166
  %v183 = vpack.c.b16 %v169, %v168
  %v184 = vpack.c.b16 %v171, %v170
  %v185 = vpack.c.b16 %v173, %v172
  %v186 = vpack.c.b16 %v175, %v174
  %v187 = vpack.c.b16 %v177, %v176
  %v188 = vpack.c.b16 %v179, %v178
  %v189 = vpack.c.b16 %v181, %v180
  %v194 = vunpack.c.l.b16 %v139
  %v195 = vunpack.c.l.b16 %v140
  %v196 = vunpack.c.l.b16 %v141
  %v197 = vunpack.c.l.b16 %v142
  %v198 = vpack.c.b16 %v195, %v194
  %v199 = vpack.c.b16 %v197, %v196
  %v203 = vsel %vm94, %v182, 0
  %v206 = vsel %vm94, %v183, 0
  %v209 = vsel %vm94, %v184, 0
  %v212 = vsel %vm94, %v185, 0
  %v215 = vsel %vm94, %v186, 0
  %v218 = vsel %vm94, %v187, 0
  %v221 = vsel %vm94, %v188, 0
  %v224 = vsel %vm94, %v189, 0
  %226 = vmatprep.subr.bf16.mxu0 0
  %227 = vmatpush1.bf16.msra.mxu0 %v198
  %228 = vmatprep.subr.bf16.mxu0 0
  %229 = vmatpush1.bf16.msra.mxu0 %v199
  %230 = vmatprep.subr.bf16.mxu0 0
  %231 = vmatpush1.bf16.msra.mxu0 0
  %232 = vmatprep.subr.bf16.mxu0 0
  %233 = vmatpush1.bf16.msra.mxu0 0
  %234 = vmatprep.subr.bf16.mxu0 0
  %235 = vmatpush1.bf16.msra.mxu0 0
  %236 = vmatprep.subr.bf16.mxu0 0
  %237 = vmatpush1.bf16.msra.mxu0 0
  %238 = vmatprep.subr.bf16.mxu0 0
  %239 = vmatpush1.bf16.msra.mxu0 0
  %240 = vmatprep.subr.bf16.mxu0 0
  %241 = vmatpush1.bf16.msra.mxu0 0
  %242 = vmatprep.subr.bf16.mxu0 0
  %243 = vmatpush1.bf16.msra.mxu0 0
  %244 = vmatprep.subr.bf16.mxu0 0
  %245 = vmatpush1.bf16.msra.mxu0 0
  %246 = vmatprep.subr.bf16.mxu0 0
  %247 = vmatpush1.bf16.msra.mxu0 0
  %248 = vmatprep.subr.bf16.mxu0 0
  %249 = vmatpush1.bf16.msra.mxu0 0
  %250 = vmatprep.subr.bf16.mxu0 0
  %251 = vmatpush1.bf16.msra.mxu0 0
  %252 = vmatprep.subr.bf16.mxu0 0
  %253 = vmatpush1.bf16.msra.mxu0 0
  %254 = vmatprep.subr.bf16.mxu0 0
  %255 = vmatpush1.bf16.msra.mxu0 0
  %256 = vmatprep.subr.bf16.mxu0 0
  %257 = vmatpush1.bf16.msra.mxu0 0
  %258 = vmatprep.mubr.bf16.mxu0 0
  %259 = vmatmul.mubr.bf16.gmra.mrb[0].mxu0 %v203
  %v260 = vpop.f32.mrb[0].mxu0
  %v261 = vadd.f32 %v148, %v260
  %v262 = vpop.f32.mrb[0].mxu0
  %v263 = vpop.f32.mrb[0].mxu0
  %v264 = vadd.f32 %v148, %v263
  %v265 = vpop.f32.mrb[0].mxu0
  %266 = vmatprep.mubr.bf16.mxu0 0
  %267 = vmatmul.mubr.bf16.gmra.mrb[0].mxu0 %v206
  %v268 = vpop.f32.mrb[0].mxu0
  %v269 = vadd.f32 %v148, %v268
  %v270 = vpop.f32.mrb[0].mxu0
  %v271 = vpop.f32.mrb[0].mxu0
  %v272 = vadd.f32 %v148, %v271
  %v273 = vpop.f32.mrb[0].mxu0
  %274 = vmatprep.mubr.bf16.mxu0 0
  %275 = vmatmul.mubr.bf16.gmra.mrb[0].mxu0 %v209
  %v276 = vpop.f32.mrb[0].mxu0
  %v277 = vadd.f32 %v148, %v276
  %v278 = vpop.f32.mrb[0].mxu0
  %v279 = vpop.f32.mrb[0].mxu0
  %v280 = vadd.f32 %v148, %v279
  %v281 = vpop.f32.mrb[0].mxu0
  %282 = vmatprep.mubr.bf16.mxu0 0
  %283 = vmatmul.mubr.bf16.gmra.mrb[0].mxu0 %v212
  %v284 = vpop.f32.mrb[0].mxu0
  %v285 = vadd.f32 %v148, %v284
  %v286 = vpop.f32.mrb[0].mxu0
  %v287 = vpop.f32.mrb[0].mxu0
  %v288 = vadd.f32 %v148, %v287
  %v289 = vpop.f32.mrb[0].mxu0
  %290 = vmatprep.mubr.bf16.mxu0 0
  %291 = vmatmul.mubr.bf16.gmra.mrb[0].mxu0 %v215
  %v292 = vpop.f32.mrb[0].mxu0
  %v293 = vadd.f32 %v148, %v292
  %v294 = vpop.f32.mrb[0].mxu0
  %v295 = vpop.f32.mrb[0].mxu0
  %v296 = vadd.f32 %v148, %v295
  %v297 = vpop.f32.mrb[0].mxu0
  %298 = vmatprep.mubr.bf16.mxu0 0
  %299 = vmatmul.mubr.bf16.gmra.mrb[0].mxu0 %v218
  %v300 = vpop.f32.mrb[0].mxu0
  %v301 = vadd.f32 %v148, %v300
  %v302 = vpop.f32.mrb[0].mxu0
  %v303 = vpop.f32.mrb[0].mxu0
  %v304 = vadd.f32 %v148, %v303
  %v305 = vpop.f32.mrb[0].mxu0
  %306 = vmatprep.mubr.bf16.mxu0 0
  %307 = vmatmul.mubr.bf16.gmra.mrb[0].mxu0 %v221
  %v308 = vpop.f32.mrb[0].mxu0
  %v309 = vadd.f32 %v148, %v308
  %v310 = vpop.f32.mrb[0].mxu0
  %v311 = vpop.f32.mrb[0].mxu0
  %v312 = vadd.f32 %v148, %v311
  %v313 = vpop.f32.mrb[0].mxu0
  %314 = vmatprep.mubr.bf16.mxu0 0
  %315 = vmatmul.mubr.bf16.gmra.mrb[0].mxu0 %v224
  %v316 = vpop.f32.mrb[0].mxu0
  %v317 = vadd.f32 %v148, %v316
  %v318 = vpop.f32.mrb[0].mxu0
  %v319 = vpop.f32.mrb[0].mxu0
  %v320 = vadd.f32 %v148, %v319
  %v321 = vpop.f32.mrb[0].mxu0
  %322 = vdwg.mxu0
  %v323 = vld [vmem:[%s6] sm:$0xf]
  %v324 = vld [vmem:[%s6 + $0x4] sm:$0xf]
  %v325 = vld [vmem:[%s6 + $0x8] sm:$0xf]
  %v326 = vld [vmem:[%s6 + $0xc] sm:$0xf]
  %v327 = vld [vmem:[%s7] sm:$0x1]
  %v329 = vlaneseq
  %v330 = vshrl.u32 %v329, 7
  %v331 = vsub.s32 0, %v330
  %v332 = vrot.slane %v327, %v331
  %v338 = vunpack.c.l.b16 %v323
  %v339 = vunpack.c.l.b16 %v324
  %v340 = vunpack.c.l.b16 %v325
  %v341 = vunpack.c.l.b16 %v326
  %v342 = vpack.c.b16 %v339, %v338
  %v343 = vpack.c.b16 %v341, %v340
  %346 = vmatprep.subr.bf16.mxu0 0
  %347 = vmatpush1.bf16.msra.mxu0 %v342
  %348 = vmatprep.subr.bf16.mxu0 0
  %349 = vmatpush1.bf16.msra.mxu0 %v343
  %350 = vmatprep.subr.bf16.mxu0 0
  %351 = vmatpush1.bf16.msra.mxu0 0
  %352 = vmatprep.subr.bf16.mxu0 0
  %353 = vmatpush1.bf16.msra.mxu0 0
  %354 = vmatprep.subr.bf16.mxu0 0
  %355 = vmatpush1.bf16.msra.mxu0 0
  %356 = vmatprep.subr.bf16.mxu0 0
  %357 = vmatpush1.bf16.msra.mxu0 0
  %358 = vmatprep.subr.bf16.mxu0 0
  %359 = vmatpush1.bf16.msra.mxu0 0
  %360 = vmatprep.subr.bf16.mxu0 0
  %361 = vmatpush1.bf16.msra.mxu0 0
  %362 = vmatprep.subr.bf16.mxu0 0
  %363 = vmatpush1.bf16.msra.mxu0 0
  %364 = vmatprep.subr.bf16.mxu0 0
  %365 = vmatpush1.bf16.msra.mxu0 0
  %366 = vmatprep.subr.bf16.mxu0 0
  %367 = vmatpush1.bf16.msra.mxu0 0
  %368 = vmatprep.subr.bf16.mxu0 0
  %369 = vmatpush1.bf16.msra.mxu0 0
  %370 = vmatprep.subr.bf16.mxu0 0
  %371 = vmatpush1.bf16.msra.mxu0 0
  %372 = vmatprep.subr.bf16.mxu0 0
  %373 = vmatpush1.bf16.msra.mxu0 0
  %374 = vmatprep.subr.bf16.mxu0 0
  %375 = vmatpush1.bf16.msra.mxu0 0
  %376 = vmatprep.subr.bf16.mxu0 0
  %377 = vmatpush1.bf16.msra.mxu0 0
  %378 = vmatprep.mubr.bf16.mxu0 0
  %379 = vmatmul.mubr.bf16.gmra.mrb[0].mxu0 %v203
  %v380 = vpop.f32.mrb[0].mxu0
  %v381 = vadd.f32 %v332, %v380
  %v382 = vpop.f32.mrb[0].mxu0
  %v383 = vpop.f32.mrb[0].mxu0
  %v384 = vadd.f32 %v332, %v383
  %v385 = vpop.f32.mrb[0].mxu0
  %386 = vmatprep.mubr.bf16.mxu0 0
  %387 = vmatmul.mubr.bf16.gmra.mrb[0].mxu0 %v206
  %v388 = vpop.f32.mrb[0].mxu0
  %v389 = vadd.f32 %v332, %v388
  %v390 = vpop.f32.mrb[0].mxu0
  %v391 = vpop.f32.mrb[0].mxu0
  %v392 = vadd.f32 %v332, %v391
  %v393 = vpop.f32.mrb[0].mxu0
  %394 = vmatprep.mubr.bf16.mxu0 0
  %395 = vmatmul.mubr.bf16.gmra.mrb[0].mxu0 %v209
  %v396 = vpop.f32.mrb[0].mxu0
  %v397 = vadd.f32 %v332, %v396
  %v398 = vpop.f32.mrb[0].mxu0
  %v399 = vpop.f32.mrb[0].mxu0
  %v400 = vadd.f32 %v332, %v399
  %v401 = vpop.f32.mrb[0].mxu0
  %402 = vmatprep.mubr.bf16.mxu0 0
  %403 = vmatmul.mubr.bf16.gmra.mrb[0].mxu0 %v212
  %v404 = vpop.f32.mrb[0].mxu0
  %v405 = vadd.f32 %v332, %v404
  %v406 = vpop.f32.mrb[0].mxu0
  %v407 = vpop.f32.mrb[0].mxu0
  %v408 = vadd.f32 %v332, %v407
  %v409 = vpop.f32.mrb[0].mxu0
  %410 = vmatprep.mubr.bf16.mxu0 0
  %411 = vmatmul.mubr.bf16.gmra.mrb[0].mxu0 %v215
  %v412 = vpop.f32.mrb[0].mxu0
  %v413 = vadd.f32 %v332, %v412
  %v414 = vpop.f32.mrb[0].mxu0
  %v415 = vpop.f32.mrb[0].mxu0
  %v416 = vadd.f32 %v332, %v415
  %v417 = vpop.f32.mrb[0].mxu0
  %418 = vmatprep.mubr.bf16.mxu0 0
  %419 = vmatmul.mubr.bf16.gmra.mrb[0].mxu0 %v218
  %v420 = vpop.f32.mrb[0].mxu0
  %v421 = vadd.f32 %v332, %v420
  %v422 = vpop.f32.mrb[0].mxu0
  %v423 = vpop.f32.mrb[0].mxu0
  %v424 = vadd.f32 %v332, %v423
  %v425 = vpop.f32.mrb[0].mxu0
  %426 = vmatprep.mubr.bf16.mxu0 0
  %427 = vmatmul.mubr.bf16.gmra.mrb[0].mxu0 %v221
  %v428 = vpop.f32.mrb[0].mxu0
  %v429 = vadd.f32 %v332, %v428
  %v430 = vpop.f32.mrb[0].mxu0
  %v431 = vpop.f32.mrb[0].mxu0
  %v432 = vadd.f32 %v332, %v431
  %v433 = vpop.f32.mrb[0].mxu0
  %434 = vmatprep.mubr.bf16.mxu0 0
  %435 = vmatmul.mubr.bf16.gmra.mrb[0].mxu0 %v224
  %v436 = vpop.f32.mrb[0].mxu0
  %v437 = vadd.f32 %v332, %v436
  %v438 = vpop.f32.mrb[0].mxu0
  %v439 = vpop.f32.mrb[0].mxu0
  %v440 = vadd.f32 %v332, %v439
  %v441 = vpop.f32.mrb[0].mxu0
  %442 = vdwg.mxu0
  %v445 = vcombine.high %v133, %v133
  %v447 = vunpack.c.l.s4 1966171168
  %v448 = vunpack.c.0.s8 %v447
  %v449 = vlaneseq
  %v450 = vshrl.u32 %v449, 7
  %v451 = vsub.s32 %v448, %v450
  %v452 = vrot.slane %v133, %v451
  %v454 = vunpack.c.l.s4 1966171168
  %v455 = vunpack.c.0.s8 %v454
  %v456 = vlaneseq
  %v457 = vshrl.u32 %v456, 7
  %v458 = vsub.s32 %v455, %v457
  %v459 = vrot.slane %v445, %v458
  %v460 = vcombine.high %v452, %v452
  %v461 = vcombine.high %v459, %v459
  %v463 = vunpack.c.l.s4 1966171168
  %v464 = vunpack.c.0.s8 %v463
  %v465 = vlaneseq
  %v466 = vshrl.u32 %v465, 7
  %v467 = vsub.s32 %v464, %v466
  %v468 = vrot.slane %v452, %v467
  %v470 = vunpack.c.l.s4 1966171168
  %v471 = vunpack.c.0.s8 %v470
  %v472 = vlaneseq
  %v473 = vshrl.u32 %v472, 7
  %v474 = vsub.s32 %v471, %v473
  %v475 = vrot.slane %v459, %v474
  %v477 = vunpack.c.l.s4 1966171168
  %v478 = vunpack.c.0.s8 %v477
  %v479 = vlaneseq
  %v480 = vshrl.u32 %v479, 7
  %v481 = vsub.s32 %v478, %v480
  %v482 = vrot.slane %v460, %v481
  %v484 = vunpack.c.l.s4 1966171168
  %v485 = vunpack.c.0.s8 %v484
  %v486 = vlaneseq
  %v487 = vshrl.u32 %v486, 7
  %v488 = vsub.s32 %v485, %v487
  %v489 = vrot.slane %v461, %v488
  %v490 = vcombine.high %v468, %v468
  %v491 = vcombine.high %v475, %v475
  %v492 = vcombine.high %v482, %v482
  %v493 = vcombine.high %v489, %v489
  %v494 = vcombine.high %v136, %v136
  %v496 = vunpack.c.l.s4 1966171168
  %v497 = vunpack.c.0.s8 %v496
  %v498 = vlaneseq
  %v499 = vshrl.u32 %v498, 7
  %v500 = vsub.s32 %v497, %v499
  %v501 = vrot.slane %v136, %v500
  %v503 = vunpack.c.l.s4 1966171168
  %v504 = vunpack.c.0.s8 %v503
  %v505 = vlaneseq
  %v506 = vshrl.u32 %v505, 7
  %v507 = vsub.s32 %v504, %v506
  %v508 = vrot.slane %v494, %v507
  %v509 = vcombine.high %v501, %v501
  %v510 = vcombine.high %v508, %v508
  %v512 = vunpack.c.l.s4 1966171168
  %v513 = vunpack.c.0.s8 %v512
  %v514 = vlaneseq
  %v515 = vshrl.u32 %v514, 7
  %v516 = vsub.s32 %v513, %v515
  %v517 = vrot.slane %v501, %v516
  %v519 = vunpack.c.l.s4 1966171168
  %v520 = vunpack.c.0.s8 %v519
  %v521 = vlaneseq
  %v522 = vshrl.u32 %v521, 7
  %v523 = vsub.s32 %v520, %v522
  %v524 = vrot.slane %v508, %v523
  %v526 = vunpack.c.l.s4 1966171168
  %v527 = vunpack.c.0.s8 %v526
  %v528 = vlaneseq
  %v529 = vshrl.u32 %v528, 7
  %v530 = vsub.s32 %v527, %v529
  %v531 = vrot.slane %v509, %v530
  %v533 = vunpack.c.l.s4 1966171168
  %v534 = vunpack.c.0.s8 %v533
  %v535 = vlaneseq
  %v536 = vshrl.u32 %v535, 7
  %v537 = vsub.s32 %v534, %v536
  %v538 = vrot.slane %v510, %v537
  %v539 = vcombine.high %v517, %v517
  %v540 = vcombine.high %v524, %v524
  %v541 = vcombine.high %v531, %v531
  %v542 = vcombine.high %v538, %v538
  %v543 = vlaneseq
  %v544 = vshrl.u32 %v543, 7
  %v545 = vsub.s32 0, %v544
  %v546 = vrot.slane %v468, %v545
  %v547 = vlaneseq
  %v548 = vshrl.u32 %v547, 7
  %v549 = vsub.s32 0, %v548
  %v550 = vrot.slane %v482, %v549
  %v551 = vlaneseq
  %v552 = vshrl.u32 %v551, 7
  %v553 = vsub.s32 0, %v552
  %v554 = vrot.slane %v490, %v553
  %v555 = vlaneseq
  %v556 = vshrl.u32 %v555, 7
  %v557 = vsub.s32 0, %v556
  %v558 = vrot.slane %v492, %v557
  %v559 = vlaneseq
  %v560 = vshrl.u32 %v559, 7
  %v561 = vsub.s32 0, %v560
  %v562 = vrot.slane %v475, %v561
  %v563 = vlaneseq
  %v564 = vshrl.u32 %v563, 7
  %v565 = vsub.s32 0, %v564
  %v566 = vrot.slane %v489, %v565
  %v567 = vlaneseq
  %v568 = vshrl.u32 %v567, 7
  %v569 = vsub.s32 0, %v568
  %v570 = vrot.slane %v491, %v569
  %v571 = vlaneseq
  %v572 = vshrl.u32 %v571, 7
  %v573 = vsub.s32 0, %v572
  %v574 = vrot.slane %v493, %v573
  %v575 = vlaneseq
  %v576 = vshrl.u32 %v575, 7
  %v577 = vsub.s32 0, %v576
  %v578 = vrot.slane %v517, %v577
  %v579 = vlaneseq
  %v580 = vshrl.u32 %v579, 7
  %v581 = vsub.s32 0, %v580
  %v582 = vrot.slane %v531, %v581
  %v583 = vlaneseq
  %v584 = vshrl.u32 %v583, 7
  %v585 = vsub.s32 0, %v584
  %v586 = vrot.slane %v539, %v585
  %v587 = vlaneseq
  %v588 = vshrl.u32 %v587, 7
  %v589 = vsub.s32 0, %v588
  %v590 = vrot.slane %v541, %v589
  %v591 = vlaneseq
  %v592 = vshrl.u32 %v591, 7
  %v593 = vsub.s32 0, %v592
  %v594 = vrot.slane %v524, %v593
  %v595 = vlaneseq
  %v596 = vshrl.u32 %v595, 7
  %v597 = vsub.s32 0, %v596
  %v598 = vrot.slane %v538, %v597
  %v599 = vlaneseq
  %v600 = vshrl.u32 %v599, 7
  %v601 = vsub.s32 0, %v600
  %v602 = vrot.slane %v540, %v601
  %v603 = vlaneseq
  %v604 = vshrl.u32 %v603, 7
  %v605 = vsub.s32 0, %v604
  %v606 = vrot.slane %v542, %v605
  %v623 = vmul.f32 %v261, %v546
  %v624 = vmul.f32 %v264, %v550
  %v625 = vmul.f32 %v269, %v554
  %v626 = vmul.f32 %v272, %v558
  %v627 = vmul.f32 %v277, %v562
  %v628 = vmul.f32 %v280, %v566
  %v629 = vmul.f32 %v285, %v570
  %v630 = vmul.f32 %v288, %v574
  %v631 = vmul.f32 %v293, %v578
  %v632 = vmul.f32 %v296, %v582
  %v633 = vmul.f32 %v301, %v586
  %v634 = vmul.f32 %v304, %v590
  %v635 = vmul.f32 %v309, %v594
  %v636 = vmul.f32 %v312, %v598
  %v637 = vmul.f32 %v317, %v602
  %v638 = vmul.f32 %v320, %v606
  %v639 = vld [vmem:[%s12] sm:$0xff]
  %v640 = vld [vmem:[%s12 + $0x8] sm:$0xff]
  %v641 = vld [vmem:[%s12 + $0x10] sm:$0xff]
  %v642 = vld [vmem:[%s12 + $0x18] sm:$0xff]
  %v644 = vsel %vm94, %v623, 0
  %v647 = vsel %vm94, %v624, 0
  %v650 = vsel %vm94, %v625, 0
  %v653 = vsel %vm94, %v626, 0
  %v656 = vsel %vm94, %v627, 0
  %v659 = vsel %vm94, %v628, 0
  %v662 = vsel %vm94, %v629, 0
  %v665 = vsel %vm94, %v630, 0
  %v668 = vsel %vm94, %v631, 0
  %v671 = vsel %vm94, %v632, 0
  %v674 = vsel %vm94, %v633, 0
  %v677 = vsel %vm94, %v634, 0
  %v680 = vsel %vm94, %v635, 0
  %v683 = vsel %vm94, %v636, 0
  %v686 = vsel %vm94, %v637, 0
  %v689 = vsel %vm94, %v638, 0
  %691 = vmatprep.subr.mxu0 0.0
  %692 = vmatpush1.msra.mxu0 %v639
  %693 = vmatprep.subr.mxu0 0.0
  %694 = vmatpush1.msra.mxu0 %v640
  %695 = vmatprep.subr.mxu0 0.0
  %696 = vmatpush1.msra.mxu0 %v641
  %697 = vmatprep.subr.mxu0 0.0
  %698 = vmatpush1.msra.mxu0 %v642
  %699 = vmatprep.subr.mxu0 0.0
  %700 = vmatpush1.msra.mxu0 0.0
  %701 = vmatprep.subr.mxu0 0.0
  %702 = vmatpush1.msra.mxu0 0.0
  %703 = vmatprep.subr.mxu0 0.0
  %704 = vmatpush1.msra.mxu0 0.0
  %705 = vmatprep.subr.mxu0 0.0
  %706 = vmatpush1.msra.mxu0 0.0
  %707 = vmatprep.subr.mxu0 0.0
  %708 = vmatpush1.msra.mxu0 0.0
  %709 = vmatprep.subr.mxu0 0.0
  %710 = vmatpush1.msra.mxu0 0.0
  %711 = vmatprep.subr.mxu0 0.0
  %712 = vmatpush1.msra.mxu0 0.0
  %713 = vmatprep.subr.mxu0 0.0
  %714 = vmatpush1.msra.mxu0 0.0
  %715 = vmatprep.subr.mxu0 0.0
  %716 = vmatpush1.msra.mxu0 0.0
  %717 = vmatprep.subr.mxu0 0.0
  %718 = vmatpush1.msra.mxu0 0.0
  %719 = vmatprep.subr.mxu0 0.0
  %720 = vmatpush1.msra.mxu0 0.0
  %721 = vmatprep.subr.mxu0 0.0
  %722 = vmatpush1.msra.mxu0 0.0
  %723 = vmatprep.subr.mxu0 0.0
  %724 = vmatpush1.msra.mxu0 0.0
  %725 = vmatprep.subr.mxu0 0.0
  %726 = vmatpush1.msra.mxu0 0.0
  %727 = vmatprep.subr.mxu0 0.0
  %728 = vmatpush1.msra.mxu0 0.0
  %729 = vmatprep.subr.mxu0 0.0
  %730 = vmatpush1.msra.mxu0 0.0
  %731 = vmatprep.subr.mxu0 0.0
  %732 = vmatpush1.msra.mxu0 0.0
  %733 = vmatprep.subr.mxu0 0.0
  %734 = vmatpush1.msra.mxu0 0.0
  %735 = vmatprep.subr.mxu0 0.0
  %736 = vmatpush1.msra.mxu0 0.0
  %737 = vmatprep.subr.mxu0 0.0
  %738 = vmatpush1.msra.mxu0 0.0
  %739 = vmatprep.subr.mxu0 0.0
  %740 = vmatpush1.msra.mxu0 0.0
  %741 = vmatprep.subr.mxu0 0.0
  %742 = vmatpush1.msra.mxu0 0.0
  %743 = vmatprep.subr.mxu0 0.0
  %744 = vmatpush1.msra.mxu0 0.0
  %745 = vmatprep.subr.mxu0 0.0
  %746 = vmatpush1.msra.mxu0 0.0
  %747 = vmatprep.subr.mxu0 0.0
  %748 = vmatpush1.msra.mxu0 0.0
  %749 = vmatprep.subr.mxu0 0.0
  %750 = vmatpush1.msra.mxu0 0.0
  %751 = vmatprep.subr.mxu0 0.0
  %752 = vmatpush1.msra.mxu0 0.0
  %753 = vmatprep.subr.mxu0 0.0
  %754 = vmatpush1.msra.mxu0 0.0
  %755 = vmatprep.mubr.f32.mxu0 0.0
  %756 = vmatmul.mubr.f32.gmra.mrb[0].mxu0 %v644
  %v757 = vpop.f32.mrb[0].mxu0
  %v758 = vadd.f32 0.0, %v757
  %v759 = vpop.f32.mrb[0].mxu0
  %760 = vmatprep.mubr.f32.mxu0 0.0
  %761 = vmatmul.mubr.f32.gmra.mrb[0].mxu0 %v647
  %v762 = vpop.f32.mrb[0].mxu0
  %v763 = vadd.f32 0.0, %v762
  %v764 = vpop.f32.mrb[0].mxu0
  %765 = vmatprep.mubr.f32.mxu0 0.0
  %766 = vmatmul.mubr.f32.gmra.mrb[0].mxu0 %v650
  %v767 = vpop.f32.mrb[0].mxu0
  %v768 = vadd.f32 0.0, %v767
  %v769 = vpop.f32.mrb[0].mxu0
  %770 = vmatprep.mubr.f32.mxu0 0.0
  %771 = vmatmul.mubr.f32.gmra.mrb[0].mxu0 %v653
  %v772 = vpop.f32.mrb[0].mxu0
  %v773 = vadd.f32 0.0, %v772
  %v774 = vpop.f32.mrb[0].mxu0
  %775 = vmatprep.mubr.f32.mxu0 0.0
  %776 = vmatmul.mubr.f32.gmra.mrb[0].mxu0 %v656
  %v777 = vpop.f32.mrb[0].mxu0
  %v778 = vadd.f32 0.0, %v777
  %v779 = vpop.f32.mrb[0].mxu0
  %780 = vmatprep.mubr.f32.mxu0 0.0
  %781 = vmatmul.mubr.f32.gmra.mrb[0].mxu0 %v659
  %v782 = vpop.f32.mrb[0].mxu0
  %v783 = vadd.f32 0.0, %v782
  %v784 = vpop.f32.mrb[0].mxu0
  %785 = vmatprep.mubr.f32.mxu0 0.0
  %786 = vmatmul.mubr.f32.gmra.mrb[0].mxu0 %v662
  %v787 = vpop.f32.mrb[0].mxu0
  %v788 = vadd.f32 0.0, %v787
  %v789 = vpop.f32.mrb[0].mxu0
  %790 = vmatprep.mubr.f32.mxu0 0.0
  %791 = vmatmul.mubr.f32.gmra.mrb[0].mxu0 %v665
  %v792 = vpop.f32.mrb[0].mxu0
  %v793 = vadd.f32 0.0, %v792
  %v794 = vpop.f32.mrb[0].mxu0
  %795 = vmatprep.mubr.f32.mxu0 0.0
  %796 = vmatmul.mubr.f32.gmra.mrb[0].mxu0 %v668
  %v797 = vpop.f32.mrb[0].mxu0
  %v798 = vadd.f32 0.0, %v797
  %v799 = vpop.f32.mrb[0].mxu0
  %800 = vmatprep.mubr.f32.mxu0 0.0
  %801 = vmatmul.mubr.f32.gmra.mrb[0].mxu0 %v671
  %v802 = vpop.f32.mrb[0].mxu0
  %v803 = vadd.f32 0.0, %v802
  %v804 = vpop.f32.mrb[0].mxu0
  %805 = vmatprep.mubr.f32.mxu0 0.0
  %806 = vmatmul.mubr.f32.gmra.mrb[0].mxu0 %v674
  %v807 = vpop.f32.mrb[0].mxu0
  %v808 = vadd.f32 0.0, %v807
  %v809 = vpop.f32.mrb[0].mxu0
  %810 = vmatprep.mubr.f32.mxu0 0.0
  %811 = vmatmul.mubr.f32.gmra.mrb[0].mxu0 %v677
  %v812 = vpop.f32.mrb[0].mxu0
  %v813 = vadd.f32 0.0, %v812
  %v814 = vpop.f32.mrb[0].mxu0
  %815 = vmatprep.mubr.f32.mxu0 0.0
  %816 = vmatmul.mubr.f32.gmra.mrb[0].mxu0 %v680
  %v817 = vpop.f32.mrb[0].mxu0
  %v818 = vadd.f32 0.0, %v817
  %v819 = vpop.f32.mrb[0].mxu0
  %820 = vmatprep.mubr.f32.mxu0 0.0
  %821 = vmatmul.mubr.f32.gmra.mrb[0].mxu0 %v683
  %v822 = vpop.f32.mrb[0].mxu0
  %v823 = vadd.f32 0.0, %v822
  %v824 = vpop.f32.mrb[0].mxu0
  %825 = vmatprep.mubr.f32.mxu0 0.0
  %826 = vmatmul.mubr.f32.gmra.mrb[0].mxu0 %v686
  %v827 = vpop.f32.mrb[0].mxu0
  %v828 = vadd.f32 0.0, %v827
  %v829 = vpop.f32.mrb[0].mxu0
  %830 = vmatprep.mubr.f32.mxu0 0.0
  %831 = vmatmul.mubr.f32.gmra.mrb[0].mxu0 %v689
  %v832 = vpop.f32.mrb[0].mxu0
  %v833 = vadd.f32 0.0, %v832
  %v834 = vpop.f32.mrb[0].mxu0
  %835 = vdwg.mxu0
  %v836 = vrot.slane %v758, 4
  %v837 = vmax.f32 %v758, %v836
  %v838 = vrot.slane %v837, 2
  %v839 = vmax.f32 %v837, %v838
  %v840 = vrot.slane %v839, 1
  %v841 = vmax.f32 %v839, %v840
  %v842 = vrot.slane %v763, 4
  %v843 = vmax.f32 %v763, %v842
  %v844 = vrot.slane %v843, 2
  %v845 = vmax.f32 %v843, %v844
  %v846 = vrot.slane %v845, 1
  %v847 = vmax.f32 %v845, %v846
  %v848 = vrot.slane %v768, 4
  %v849 = vmax.f32 %v768, %v848
  %v850 = vrot.slane %v849, 2
  %v851 = vmax.f32 %v849, %v850
  %v852 = vrot.slane %v851, 1
  %v853 = vmax.f32 %v851, %v852
  %v854 = vrot.slane %v773, 4
  %v855 = vmax.f32 %v773, %v854
  %v856 = vrot.slane %v855, 2
  %v857 = vmax.f32 %v855, %v856
  %v858 = vrot.slane %v857, 1
  %v859 = vmax.f32 %v857, %v858
  %v860 = vrot.slane %v778, 4
  %v861 = vmax.f32 %v778, %v860
  %v862 = vrot.slane %v861, 2
  %v863 = vmax.f32 %v861, %v862
  %v864 = vrot.slane %v863, 1
  %v865 = vmax.f32 %v863, %v864
  %v866 = vrot.slane %v783, 4
  %v867 = vmax.f32 %v783, %v866
  %v868 = vrot.slane %v867, 2
  %v869 = vmax.f32 %v867, %v868
  %v870 = vrot.slane %v869, 1
  %v871 = vmax.f32 %v869, %v870
  %v872 = vrot.slane %v788, 4
  %v873 = vmax.f32 %v788, %v872
  %v874 = vrot.slane %v873, 2
  %v875 = vmax.f32 %v873, %v874
  %v876 = vrot.slane %v875, 1
  %v877 = vmax.f32 %v875, %v876
  %v878 = vrot.slane %v793, 4
  %v879 = vmax.f32 %v793, %v878
  %v880 = vrot.slane %v879, 2
  %v881 = vmax.f32 %v879, %v880
  %v882 = vrot.slane %v881, 1
  %v883 = vmax.f32 %v881, %v882
  %v884 = vrot.slane %v798, 4
  %v885 = vmax.f32 %v798, %v884
  %v886 = vrot.slane %v885, 2
  %v887 = vmax.f32 %v885, %v886
  %v888 = vrot.slane %v887, 1
  %v889 = vmax.f32 %v887, %v888
  %v890 = vrot.slane %v803, 4
  %v891 = vmax.f32 %v803, %v890
  %v892 = vrot.slane %v891, 2
  %v893 = vmax.f32 %v891, %v892
  %v894 = vrot.slane %v893, 1
  %v895 = vmax.f32 %v893, %v894
  %v896 = vrot.slane %v808, 4
  %v897 = vmax.f32 %v808, %v896
  %v898 = vrot.slane %v897, 2
  %v899 = vmax.f32 %v897, %v898
  %v900 = vrot.slane %v899, 1
  %v901 = vmax.f32 %v899, %v900
  %v902 = vrot.slane %v813, 4
  %v903 = vmax.f32 %v813, %v902
  %v904 = vrot.slane %v903, 2
  %v905 = vmax.f32 %v903, %v904
  %v906 = vrot.slane %v905, 1
  %v907 = vmax.f32 %v905, %v906
  %v908 = vrot.slane %v818, 4
  %v909 = vmax.f32 %v818, %v908
  %v910 = vrot.slane %v909, 2
  %v911 = vmax.f32 %v909, %v910
  %v912 = vrot.slane %v911, 1
  %v913 = vmax.f32 %v911, %v912
  %v914 = vrot.slane %v823, 4
  %v915 = vmax.f32 %v823, %v914
  %v916 = vrot.slane %v915, 2
  %v917 = vmax.f32 %v915, %v916
  %v918 = vrot.slane %v917, 1
  %v919 = vmax.f32 %v917, %v918
  %v920 = vrot.slane %v828, 4
  %v921 = vmax.f32 %v828, %v920
  %v922 = vrot.slane %v921, 2
  %v923 = vmax.f32 %v921, %v922
  %v924 = vrot.slane %v923, 1
  %v925 = vmax.f32 %v923, %v924
  %v926 = vrot.slane %v833, 4
  %v927 = vmax.f32 %v833, %v926
  %v928 = vrot.slane %v927, 2
  %v929 = vmax.f32 %v927, %v928
  %v930 = vrot.slane %v929, 1
  %v931 = vmax.f32 %v929, %v930
  %v932 = vsub.f32 %v758, %v841
  %v933 = vsub.f32 %v763, %v847
  %v934 = vsub.f32 %v768, %v853
  %v935 = vsub.f32 %v773, %v859
  %v936 = vsub.f32 %v778, %v865
  %v937 = vsub.f32 %v783, %v871
  %v938 = vsub.f32 %v788, %v877
  %v939 = vsub.f32 %v793, %v883
  %v940 = vsub.f32 %v798, %v889
  %v941 = vsub.f32 %v803, %v895
  %v942 = vsub.f32 %v808, %v901
  %v943 = vsub.f32 %v813, %v907
  %v944 = vsub.f32 %v818, %v913
  %v945 = vsub.f32 %v823, %v919
  %v946 = vsub.f32 %v828, %v925
  %v947 = vsub.f32 %v833, %v931
  %v948 = vmul.f32 %v932, 1.442695
  %v949 = vpow.pop %v948
  %v950 = vmul.f32 %v933, 1.442695
  %v951 = vpow.pop %v950
  %v952 = vmul.f32 %v934, 1.442695
  %v953 = vpow.pop %v952
  %v954 = vmul.f32 %v935, 1.442695
  %v955 = vpow.pop %v954
  %v956 = vmul.f32 %v936, 1.442695
  %v957 = vpow.pop %v956
  %v958 = vmul.f32 %v937, 1.442695
  %v959 = vpow.pop %v958
  %v960 = vmul.f32 %v938, 1.442695
  %v961 = vpow.pop %v960
  %v962 = vmul.f32 %v939, 1.442695
  %v963 = vpow.pop %v962
  %v964 = vmul.f32 %v940, 1.442695
  %v965 = vpow.pop %v964
  %v966 = vmul.f32 %v941, 1.442695
  %v967 = vpow.pop %v966
  %v968 = vmul.f32 %v942, 1.442695
  %v969 = vpow.pop %v968
  %v970 = vmul.f32 %v943, 1.442695
  %v971 = vpow.pop %v970
  %v972 = vmul.f32 %v944, 1.442695
  %v973 = vpow.pop %v972
  %v974 = vmul.f32 %v945, 1.442695
  %v975 = vpow.pop %v974
  %v976 = vmul.f32 %v946, 1.442695
  %v977 = vpow.pop %v976
  %v978 = vmul.f32 %v947, 1.442695
  %v979 = vpow.pop %v978
  %v980 = vrot.slane %v949, 4
  %v981 = vadd.f32 %v949, %v980
  %v982 = vrot.slane %v981, 2
  %v983 = vadd.f32 %v981, %v982
  %v984 = vrot.slane %v983, 1
  %v985 = vadd.f32 %v983, %v984
  %v986 = vrot.slane %v951, 4
  %v987 = vadd.f32 %v951, %v986
  %v988 = vrot.slane %v987, 2
  %v989 = vadd.f32 %v987, %v988
  %v990 = vrot.slane %v989, 1
  %v991 = vadd.f32 %v989, %v990
  %v992 = vrot.slane %v953, 4
  %v993 = vadd.f32 %v953, %v992
  %v994 = vrot.slane %v993, 2
  %v995 = vadd.f32 %v993, %v994
  %v996 = vrot.slane %v995, 1
  %v997 = vadd.f32 %v995, %v996
  %v998 = vrot.slane %v955, 4
  %v999 = vadd.f32 %v955, %v998
  %v1000 = vrot.slane %v999, 2
  %v1001 = vadd.f32 %v999, %v1000
  %v1002 = vrot.slane %v1001, 1
  %v1003 = vadd.f32 %v1001, %v1002
  %v1004 = vrot.slane %v957, 4
  %v1005 = vadd.f32 %v957, %v1004
  %v1006 = vrot.slane %v1005, 2
  %v1007 = vadd.f32 %v1005, %v1006
  %v1008 = vrot.slane %v1007, 1
  %v1009 = vadd.f32 %v1007, %v1008
  %v1010 = vrot.slane %v959, 4
  %v1011 = vadd.f32 %v959, %v1010
  %v1012 = vrot.slane %v1011, 2
  %v1013 = vadd.f32 %v1011, %v1012
  %v1014 = vrot.slane %v1013, 1
  %v1015 = vadd.f32 %v1013, %v1014
  %v1016 = vrot.slane %v961, 4
  %v1017 = vadd.f32 %v961, %v1016
  %v1018 = vrot.slane %v1017, 2
  %v1019 = vadd.f32 %v1017, %v1018
  %v1020 = vrot.slane %v1019, 1
  %v1021 = vadd.f32 %v1019, %v1020
  %v1022 = vrot.slane %v963, 4
  %v1023 = vadd.f32 %v963, %v1022
  %v1024 = vrot.slane %v1023, 2
  %v1025 = vadd.f32 %v1023, %v1024
  %v1026 = vrot.slane %v1025, 1
  %v1027 = vadd.f32 %v1025, %v1026
  %v1028 = vrot.slane %v965, 4
  %v1029 = vadd.f32 %v965, %v1028
  %v1030 = vrot.slane %v1029, 2
  %v1031 = vadd.f32 %v1029, %v1030
  %v1032 = vrot.slane %v1031, 1
  %v1033 = vadd.f32 %v1031, %v1032
  %v1034 = vrot.slane %v967, 4
  %v1035 = vadd.f32 %v967, %v1034
  %v1036 = vrot.slane %v1035, 2
  %v1037 = vadd.f32 %v1035, %v1036
  %v1038 = vrot.slane %v1037, 1
  %v1039 = vadd.f32 %v1037, %v1038
  %v1040 = vrot.slane %v969, 4
  %v1041 = vadd.f32 %v969, %v1040
  %v1042 = vrot.slane %v1041, 2
  %v1043 = vadd.f32 %v1041, %v1042
  %v1044 = vrot.slane %v1043, 1
  %v1045 = vadd.f32 %v1043, %v1044
  %v1046 = vrot.slane %v971, 4
  %v1047 = vadd.f32 %v971, %v1046
  %v1048 = vrot.slane %v1047, 2
  %v1049 = vadd.f32 %v1047, %v1048
  %v1050 = vrot.slane %v1049, 1
  %v1051 = vadd.f32 %v1049, %v1050
  %v1052 = vrot.slane %v973, 4
  %v1053 = vadd.f32 %v973, %v1052
  %v1054 = vrot.slane %v1053, 2
  %v1055 = vadd.f32 %v1053, %v1054
  %v1056 = vrot.slane %v1055, 1
  %v1057 = vadd.f32 %v1055, %v1056
  %v1058 = vrot.slane %v975, 4
  %v1059 = vadd.f32 %v975, %v1058
  %v1060 = vrot.slane %v1059, 2
  %v1061 = vadd.f32 %v1059, %v1060
  %v1062 = vrot.slane %v1061, 1
  %v1063 = vadd.f32 %v1061, %v1062
  %v1064 = vrot.slane %v977, 4
  %v1065 = vadd.f32 %v977, %v1064
  %v1066 = vrot.slane %v1065, 2
  %v1067 = vadd.f32 %v1065, %v1066
  %v1068 = vrot.slane %v1067, 1
  %v1069 = vadd.f32 %v1067, %v1068
  %v1070 = vrot.slane %v979, 4
  %v1071 = vadd.f32 %v979, %v1070
  %v1072 = vrot.slane %v1071, 2
  %v1073 = vadd.f32 %v1071, %v1072
  %v1074 = vrot.slane %v1073, 1
  %v1075 = vadd.f32 %v1073, %v1074
  %v1076 = vrcp.pop %v985
  %v1077 = vrcp.pop %v991
  %v1078 = vrcp.pop %v997
  %v1079 = vrcp.pop %v1003
  %v1080 = vrcp.pop %v1009
  %v1081 = vrcp.pop %v1015
  %v1082 = vrcp.pop %v1021
  %v1083 = vrcp.pop %v1027
  %v1084 = vrcp.pop %v1033
  %v1085 = vrcp.pop %v1039
  %v1086 = vrcp.pop %v1045
  %v1087 = vrcp.pop %v1051
  %v1088 = vrcp.pop %v1057
  %v1089 = vrcp.pop %v1063
  %v1090 = vrcp.pop %v1069
  %v1091 = vrcp.pop %v1075
  %v1092 = vmul.f32 %v949, %v1076
  %v1093 = vmul.f32 %v951, %v1077
  %v1094 = vmul.f32 %v953, %v1078
  %v1095 = vmul.f32 %v955, %v1079
  %v1096 = vmul.f32 %v957, %v1080
  %v1097 = vmul.f32 %v959, %v1081
  %v1098 = vmul.f32 %v961, %v1082
  %v1099 = vmul.f32 %v963, %v1083
  %v1100 = vmul.f32 %v965, %v1084
  %v1101 = vmul.f32 %v967, %v1085
  %v1102 = vmul.f32 %v969, %v1086
  %v1103 = vmul.f32 %v971, %v1087
  %v1104 = vmul.f32 %v973, %v1088
  %v1105 = vmul.f32 %v975, %v1089
  %v1106 = vmul.f32 %v977, %v1090
  %v1107 = vmul.f32 %v979, %v1091
  %v1108 = vld [vmem:[%s13] sm:$0xff]
  %v1109 = vld [vmem:[%s13 + $0x8] sm:$0xff]
  %v1110 = vld [vmem:[%s13 + $0x10] sm:$0xff]
  %v1111 = vld [vmem:[%s13 + $0x18] sm:$0xff]
  %v1112 = vld [vmem:[%s13 + $0x20] sm:$0xff]
  %v1113 = vld [vmem:[%s13 + $0x28] sm:$0xff]
  %v1114 = vld [vmem:[%s13 + $0x30] sm:$0xff]
  %v1115 = vld [vmem:[%s13 + $0x38] sm:$0xff]
  %v1116 = vld [vmem:[%s13 + $0x40] sm:$0xff]
  %v1117 = vld [vmem:[%s13 + $0x48] sm:$0xff]
  %v1118 = vld [vmem:[%s13 + $0x50] sm:$0xff]
  %v1119 = vld [vmem:[%s13 + $0x58] sm:$0xff]
  %v1120 = vld [vmem:[%s13 + $0x60] sm:$0xff]
  %v1121 = vld [vmem:[%s13 + $0x68] sm:$0xff]
  %v1122 = vld [vmem:[%s13 + $0x70] sm:$0xff]
  %v1123 = vld [vmem:[%s13 + $0x78] sm:$0xff]
  %1124 = vmatprep.subr.mxu0 0.0
  %1125 = vmatpush1.msra.mxu0 %v1108
  %1126 = vmatprep.subr.mxu0 0.0
  %1127 = vmatpush1.msra.mxu0 %v1109
  %1128 = vmatprep.subr.mxu0 0.0
  %1129 = vmatpush1.msra.mxu0 %v1110
  %1130 = vmatprep.subr.mxu0 0.0
  %1131 = vmatpush1.msra.mxu0 %v1111
  %1132 = vmatprep.subr.mxu0 0.0
  %1133 = vmatpush1.msra.mxu0 %v1112
  %1134 = vmatprep.subr.mxu0 0.0
  %1135 = vmatpush1.msra.mxu0 %v1113
  %1136 = vmatprep.subr.mxu0 0.0
  %1137 = vmatpush1.msra.mxu0 %v1114
  %1138 = vmatprep.subr.mxu0 0.0
  %1139 = vmatpush1.msra.mxu0 %v1115
  %1140 = vmatprep.subr.mxu0 0.0
  %1141 = vmatpush1.msra.mxu0 %v1116
  %1142 = vmatprep.subr.mxu0 0.0
  %1143 = vmatpush1.msra.mxu0 %v1117
  %1144 = vmatprep.subr.mxu0 0.0
  %1145 = vmatpush1.msra.mxu0 %v1118
  %1146 = vmatprep.subr.mxu0 0.0
  %1147 = vmatpush1.msra.mxu0 %v1119
  %1148 = vmatprep.subr.mxu0 0.0
  %1149 = vmatpush1.msra.mxu0 %v1120
  %1150 = vmatprep.subr.mxu0 0.0
  %1151 = vmatpush1.msra.mxu0 %v1121
  %1152 = vmatprep.subr.mxu0 0.0
  %1153 = vmatpush1.msra.mxu0 %v1122
  %1154 = vmatprep.subr.mxu0 0.0
  %1155 = vmatpush1.msra.mxu0 %v1123
  %1156 = vmatprep.subr.mxu0 0.0
  %1157 = vmatpush1.msra.mxu0 0.0
  %1158 = vmatprep.subr.mxu0 0.0
  %1159 = vmatpush1.msra.mxu0 0.0
  %1160 = vmatprep.subr.mxu0 0.0
  %1161 = vmatpush1.msra.mxu0 0.0
  %1162 = vmatprep.subr.mxu0 0.0
  %1163 = vmatpush1.msra.mxu0 0.0
  %1164 = vmatprep.subr.mxu0 0.0
  %1165 = vmatpush1.msra.mxu0 0.0
  %1166 = vmatprep.subr.mxu0 0.0
  %1167 = vmatpush1.msra.mxu0 0.0
  %1168 = vmatprep.subr.mxu0 0.0
  %1169 = vmatpush1.msra.mxu0 0.0
  %1170 = vmatprep.subr.mxu0 0.0
  %1171 = vmatpush1.msra.mxu0 0.0
  %1172 = vmatprep.subr.mxu0 0.0
  %1173 = vmatpush1.msra.mxu0 0.0
  %1174 = vmatprep.subr.mxu0 0.0
  %1175 = vmatpush1.msra.mxu0 0.0
  %1176 = vmatprep.subr.mxu0 0.0
  %1177 = vmatpush1.msra.mxu0 0.0
  %1178 = vmatprep.subr.mxu0 0.0
  %1179 = vmatpush1.msra.mxu0 0.0
  %1180 = vmatprep.subr.mxu0 0.0
  %1181 = vmatpush1.msra.mxu0 0.0
  %1182 = vmatprep.subr.mxu0 0.0
  %1183 = vmatpush1.msra.mxu0 0.0
  %1184 = vmatprep.subr.mxu0 0.0
  %1185 = vmatpush1.msra.mxu0 0.0
  %1186 = vmatprep.subr.mxu0 0.0
  %1187 = vmatpush1.msra.mxu0 0.0
  %1188 = vmatprep.mubr.f32.mxu0 0.0
  %1189 = vmatmul.mubr.f32.gmra.mrb[0].mxu0 %v1092
  %v1190 = vpop.f32.mrb[0].mxu0
  %v1191 = vadd.f32 0.0, %v1190
  %v1192 = vpop.f32.mrb[0].mxu0
  %1193 = vmatprep.mubr.f32.mxu0 0.0
  %1194 = vmatmul.mubr.f32.gmra.mrb[0].mxu0 %v1093
  %v1195 = vpop.f32.mrb[0].mxu0
  %v1196 = vadd.f32 0.0, %v1195
  %v1197 = vpop.f32.mrb[0].mxu0
  %1198 = vmatprep.mubr.f32.mxu0 0.0
  %1199 = vmatmul.mubr.f32.gmra.mrb[0].mxu0 %v1094
  %v1200 = vpop.f32.mrb[0].mxu0
  %v1201 = vadd.f32 0.0, %v1200
  %v1202 = vpop.f32.mrb[0].mxu0
  %1203 = vmatprep.mubr.f32.mxu0 0.0
  %1204 = vmatmul.mubr.f32.gmra.mrb[0].mxu0 %v1095
  %v1205 = vpop.f32.mrb[0].mxu0
  %v1206 = vadd.f32 0.0, %v1205
  %v1207 = vpop.f32.mrb[0].mxu0
  %1208 = vmatprep.mubr.f32.mxu0 0.0
  %1209 = vmatmul.mubr.f32.gmra.mrb[0].mxu0 %v1096
  %v1210 = vpop.f32.mrb[0].mxu0
  %v1211 = vadd.f32 0.0, %v1210
  %v1212 = vpop.f32.mrb[0].mxu0
  %1213 = vmatprep.mubr.f32.mxu0 0.0
  %1214 = vmatmul.mubr.f32.gmra.mrb[0].mxu0 %v1097
  %v1215 = vpop.f32.mrb[0].mxu0
  %v1216 = vadd.f32 0.0, %v1215
  %v1217 = vpop.f32.mrb[0].mxu0
  %1218 = vmatprep.mubr.f32.mxu0 0.0
  %1219 = vmatmul.mubr.f32.gmra.mrb[0].mxu0 %v1098
  %v1220 = vpop.f32.mrb[0].mxu0
  %v1221 = vadd.f32 0.0, %v1220
  %v1222 = vpop.f32.mrb[0].mxu0
  %1223 = vmatprep.mubr.f32.mxu0 0.0
  %1224 = vmatmul.mubr.f32.gmra.mrb[0].mxu0 %v1099
  %v1225 = vpop.f32.mrb[0].mxu0
  %v1226 = vadd.f32 0.0, %v1225
  %v1227 = vpop.f32.mrb[0].mxu0
  %1228 = vmatprep.mubr.f32.mxu0 0.0
  %1229 = vmatmul.mubr.f32.gmra.mrb[0].mxu0 %v1100
  %v1230 = vpop.f32.mrb[0].mxu0
  %v1231 = vadd.f32 0.0, %v1230
  %v1232 = vpop.f32.mrb[0].mxu0
  %1233 = vmatprep.mubr.f32.mxu0 0.0
  %1234 = vmatmul.mubr.f32.gmra.mrb[0].mxu0 %v1101
  %v1235 = vpop.f32.mrb[0].mxu0
  %v1236 = vadd.f32 0.0, %v1235
  %v1237 = vpop.f32.mrb[0].mxu0
  %1238 = vmatprep.mubr.f32.mxu0 0.0
  %1239 = vmatmul.mubr.f32.gmra.mrb[0].mxu0 %v1102
  %v1240 = vpop.f32.mrb[0].mxu0
  %v1241 = vadd.f32 0.0, %v1240
  %v1242 = vpop.f32.mrb[0].mxu0
  %1243 = vmatprep.mubr.f32.mxu0 0.0
  %1244 = vmatmul.mubr.f32.gmra.mrb[0].mxu0 %v1103
  %v1245 = vpop.f32.mrb[0].mxu0
  %v1246 = vadd.f32 0.0, %v1245
  %v1247 = vpop.f32.mrb[0].mxu0
  %1248 = vmatprep.mubr.f32.mxu0 0.0
  %1249 = vmatmul.mubr.f32.gmra.mrb[0].mxu0 %v1104
  %v1250 = vpop.f32.mrb[0].mxu0
  %v1251 = vadd.f32 0.0, %v1250
  %v1252 = vpop.f32.mrb[0].mxu0
  %1253 = vmatprep.mubr.f32.mxu0 0.0
  %1254 = vmatmul.mubr.f32.gmra.mrb[0].mxu0 %v1105
  %v1255 = vpop.f32.mrb[0].mxu0
  %v1256 = vadd.f32 0.0, %v1255
  %v1257 = vpop.f32.mrb[0].mxu0
  %1258 = vmatprep.mubr.f32.mxu0 0.0
  %1259 = vmatmul.mubr.f32.gmra.mrb[0].mxu0 %v1106
  %v1260 = vpop.f32.mrb[0].mxu0
  %v1261 = vadd.f32 0.0, %v1260
  %v1262 = vpop.f32.mrb[0].mxu0
  %1263 = vmatprep.mubr.f32.mxu0 0.0
  %1264 = vmatmul.mubr.f32.gmra.mrb[0].mxu0 %v1107
  %v1265 = vpop.f32.mrb[0].mxu0
  %v1266 = vadd.f32 0.0, %v1265
  %v1267 = vpop.f32.mrb[0].mxu0
  %1268 = vdwg.mxu0
  %v1269 = vmul.f32 %v1191, %v381
  %v1270 = vmul.f32 %v1196, %v384
  %v1271 = vmul.f32 %v1201, %v389
  %v1272 = vmul.f32 %v1206, %v392
  %v1273 = vmul.f32 %v1211, %v397
  %v1274 = vmul.f32 %v1216, %v400
  %v1275 = vmul.f32 %v1221, %v405
  %v1276 = vmul.f32 %v1226, %v408
  %v1277 = vmul.f32 %v1231, %v413
  %v1278 = vmul.f32 %v1236, %v416
  %v1279 = vmul.f32 %v1241, %v421
  %v1280 = vmul.f32 %v1246, %v424
  %v1281 = vmul.f32 %v1251, %v429
  %v1282 = vmul.f32 %v1256, %v432
  %v1283 = vmul.f32 %v1261, %v437
  %v1284 = vmul.f32 %v1266, %v440
  %v1285 = vsel %vm94, %v1269, 0.0
  %v1286 = vrot.slane %v1285, 4
  %v1287 = vadd.f32 %v1285, %v1286
  %v1288 = vrot.slane %v1287, 2
  %v1289 = vadd.f32 %v1287, %v1288
  %v1290 = vrot.slane %v1289, 1
  %v1291 = vadd.f32 %v1289, %v1290
  %v1292 = vsel %vm94, %v1270, 0.0
  %v1293 = vrot.slane %v1292, 4
  %v1294 = vadd.f32 %v1292, %v1293
  %v1295 = vrot.slane %v1294, 2
  %v1296 = vadd.f32 %v1294, %v1295
  %v1297 = vrot.slane %v1296, 1
  %v1298 = vadd.f32 %v1296, %v1297
  %v1299 = vsel %vm94, %v1271, 0.0
  %v1300 = vrot.slane %v1299, 4
  %v1301 = vadd.f32 %v1299, %v1300
  %v1302 = vrot.slane %v1301, 2
  %v1303 = vadd.f32 %v1301, %v1302
  %v1304 = vrot.slane %v1303, 1
  %v1305 = vadd.f32 %v1303, %v1304
  %v1306 = vsel %vm94, %v1272, 0.0
  %v1307 = vrot.slane %v1306, 4
  %v1308 = vadd.f32 %v1306, %v1307
  %v1309 = vrot.slane %v1308, 2
  %v1310 = vadd.f32 %v1308, %v1309
  %v1311 = vrot.slane %v1310, 1
  %v1312 = vadd.f32 %v1310, %v1311
  %v1313 = vsel %vm94, %v1273, 0.0
  %v1314 = vrot.slane %v1313, 4
  %v1315 = vadd.f32 %v1313, %v1314
  %v1316 = vrot.slane %v1315, 2
  %v1317 = vadd.f32 %v1315, %v1316
  %v1318 = vrot.slane %v1317, 1
  %v1319 = vadd.f32 %v1317, %v1318
  %v1320 = vsel %vm94, %v1274, 0.0
  %v1321 = vrot.slane %v1320, 4
  %v1322 = vadd.f32 %v1320, %v1321
  %v1323 = vrot.slane %v1322, 2
  %v1324 = vadd.f32 %v1322, %v1323
  %v1325 = vrot.slane %v1324, 1
  %v1326 = vadd.f32 %v1324, %v1325
  %v1327 = vsel %vm94, %v1275, 0.0
  %v1328 = vrot.slane %v1327, 4
  %v1329 = vadd.f32 %v1327, %v1328
  %v1330 = vrot.slane %v1329, 2
  %v1331 = vadd.f32 %v1329, %v1330
  %v1332 = vrot.slane %v1331, 1
  %v1333 = vadd.f32 %v1331, %v1332
  %v1334 = vsel %vm94, %v1276, 0.0
  %v1335 = vrot.slane %v1334, 4
  %v1336 = vadd.f32 %v1334, %v1335
  %v1337 = vrot.slane %v1336, 2
  %v1338 = vadd.f32 %v1336, %v1337
  %v1339 = vrot.slane %v1338, 1
  %v1340 = vadd.f32 %v1338, %v1339
  %v1341 = vsel %vm94, %v1277, 0.0
  %v1342 = vrot.slane %v1341, 4
  %v1343 = vadd.f32 %v1341, %v1342
  %v1344 = vrot.slane %v1343, 2
  %v1345 = vadd.f32 %v1343, %v1344
  %v1346 = vrot.slane %v1345, 1
  %v1347 = vadd.f32 %v1345, %v1346
  %v1348 = vsel %vm94, %v1278, 0.0
  %v1349 = vrot.slane %v1348, 4
  %v1350 = vadd.f32 %v1348, %v1349
  %v1351 = vrot.slane %v1350, 2
  %v1352 = vadd.f32 %v1350, %v1351
  %v1353 = vrot.slane %v1352, 1
  %v1354 = vadd.f32 %v1352, %v1353
  %v1355 = vsel %vm94, %v1279, 0.0
  %v1356 = vrot.slane %v1355, 4
  %v1357 = vadd.f32 %v1355, %v1356
  %v1358 = vrot.slane %v1357, 2
  %v1359 = vadd.f32 %v1357, %v1358
  %v1360 = vrot.slane %v1359, 1
  %v1361 = vadd.f32 %v1359, %v1360
  %v1362 = vsel %vm94, %v1280, 0.0
  %v1363 = vrot.slane %v1362, 4
  %v1364 = vadd.f32 %v1362, %v1363
  %v1365 = vrot.slane %v1364, 2
  %v1366 = vadd.f32 %v1364, %v1365
  %v1367 = vrot.slane %v1366, 1
  %v1368 = vadd.f32 %v1366, %v1367
  %v1369 = vsel %vm94, %v1281, 0.0
  %v1370 = vrot.slane %v1369, 4
  %v1371 = vadd.f32 %v1369, %v1370
  %v1372 = vrot.slane %v1371, 2
  %v1373 = vadd.f32 %v1371, %v1372
  %v1374 = vrot.slane %v1373, 1
  %v1375 = vadd.f32 %v1373, %v1374
  %v1376 = vsel %vm94, %v1282, 0.0
  %v1377 = vrot.slane %v1376, 4
  %v1378 = vadd.f32 %v1376, %v1377
  %v1379 = vrot.slane %v1378, 2
  %v1380 = vadd.f32 %v1378, %v1379
  %v1381 = vrot.slane %v1380, 1
  %v1382 = vadd.f32 %v1380, %v1381
  %v1383 = vsel %vm94, %v1283, 0.0
  %v1384 = vrot.slane %v1383, 4
  %v1385 = vadd.f32 %v1383, %v1384
  %v1386 = vrot.slane %v1385, 2
  %v1387 = vadd.f32 %v1385, %v1386
  %v1388 = vrot.slane %v1387, 1
  %v1389 = vadd.f32 %v1387, %v1388
  %v1390 = vsel %vm94, %v1284, 0.0
  %v1391 = vrot.slane %v1390, 4
  %v1392 = vadd.f32 %v1390, %v1391
  %v1393 = vrot.slane %v1392, 2
  %v1394 = vadd.f32 %v1392, %v1393
  %v1395 = vrot.slane %v1394, 1
  %v1396 = vadd.f32 %v1394, %v1395
  %v1397 = vpack.c.bf16 %v1291, %v1291
  %v1398 = vpack.c.bf16 %v1298, %v1298
  %v1399 = vpack.c.bf16 %v1305, %v1305
  %v1400 = vpack.c.bf16 %v1312, %v1312
  %v1401 = vpack.c.bf16 %v1319, %v1319
  %v1402 = vpack.c.bf16 %v1326, %v1326
  %v1403 = vpack.c.bf16 %v1333, %v1333
  %v1404 = vpack.c.bf16 %v1340, %v1340
  %v1405 = vpack.c.bf16 %v1347, %v1347
  %v1406 = vpack.c.bf16 %v1354, %v1354
  %v1407 = vpack.c.bf16 %v1361, %v1361
  %v1408 = vpack.c.bf16 %v1368, %v1368
  %v1409 = vpack.c.bf16 %v1375, %v1375
  %v1410 = vpack.c.bf16 %v1382, %v1382
  %v1411 = vpack.c.bf16 %v1389, %v1389
  %v1412 = vpack.c.bf16 %v1396, %v1396
  %v1413 = vld [vmem:[%s8] sm:$0xf]
  %v1414 = vld [vmem:[%s8 + $0x4] sm:$0xf]
  %v1415 = vld [vmem:[%s8 + $0x8] sm:$0xf]
  %v1416 = vld [vmem:[%s8 + $0xc] sm:$0xf]
  %v1417 = vld [vmem:[%s9] sm:$0x1]
  %v1419 = vlaneseq
  %v1420 = vshrl.u32 %v1419, 7
  %v1421 = vsub.s32 0, %v1420
  %v1422 = vrot.slane %v1417, %v1421
  %v1440 = vunpack.c.l.b16 %v1397
  %v1441 = vunpack.c.l.b16 %v1398
  %v1442 = vunpack.c.l.b16 %v1399
  %v1443 = vunpack.c.l.b16 %v1400
  %v1444 = vunpack.c.l.b16 %v1401
  %v1445 = vunpack.c.l.b16 %v1402
  %v1446 = vunpack.c.l.b16 %v1403
  %v1447 = vunpack.c.l.b16 %v1404
  %v1448 = vunpack.c.l.b16 %v1405
  %v1449 = vunpack.c.l.b16 %v1406
  %v1450 = vunpack.c.l.b16 %v1407
  %v1451 = vunpack.c.l.b16 %v1408
  %v1452 = vunpack.c.l.b16 %v1409
  %v1453 = vunpack.c.l.b16 %v1410
  %v1454 = vunpack.c.l.b16 %v1411
  %v1455 = vunpack.c.l.b16 %v1412
  %vm1456 = vcmask 1041409
  %v1457 = vsel %vm1456, %v1441, %v1440
  %vm1458 = vcmask 1042434
  %v1459 = vsel %vm1458, %v1442, %v1457
  %vm1460 = vcmask 1043459
  %v1461 = vsel %vm1460, %v1443, %v1459
  %vm1462 = vcmask 1044484
  %v1463 = vsel %vm1462, %v1444, %v1461
  %vm1464 = vcmask 1045509
  %v1465 = vsel %vm1464, %v1445, %v1463
  %vm1466 = vcmask 1046534
  %v1467 = vsel %vm1466, %v1446, %v1465
  %vm1468 = vcmask 1047559
  %v1469 = vsel %vm1468, %v1447, %v1467
  %v1470 = vsel %vm1456, %v1449, %v1448
  %v1471 = vsel %vm1458, %v1450, %v1470
  %v1472 = vsel %vm1460, %v1451, %v1471
  %v1473 = vsel %vm1462, %v1452, %v1472
  %v1474 = vsel %vm1464, %v1453, %v1473
  %v1475 = vsel %vm1466, %v1454, %v1474
  %v1476 = vsel %vm1468, %v1455, %v1475
  %v1477 = vpack.c.b16 %v1476, %v1469
  %v1482 = vunpack.c.l.b16 %v1413
  %v1483 = vunpack.c.l.b16 %v1414
  %v1484 = vunpack.c.l.b16 %v1415
  %v1485 = vunpack.c.l.b16 %v1416
  %v1486 = vpack.c.b16 %v1483, %v1482
  %v1487 = vpack.c.b16 %v1485, %v1484
  %v1491 = vsel %vm94, %v1477, 0
  %1493 = vmatprep.subr.bf16.mxu0 0
  %1494 = vmatpush1.bf16.msra.mxu0 %v1486
  %1495 = vmatprep.subr.bf16.mxu0 0
  %1496 = vmatpush1.bf16.msra.mxu0 %v1487
  %1497 = vmatprep.subr.bf16.mxu0 0
  %1498 = vmatpush1.bf16.msra.mxu0 0
  %1499 = vmatprep.subr.bf16.mxu0 0
  %1500 = vmatpush1.bf16.msra.mxu0 0
  %1501 = vmatprep.subr.bf16.mxu0 0
  %1502 = vmatpush1.bf16.msra.mxu0 0
  %1503 = vmatprep.subr.bf16.mxu0 0
  %1504 = vmatpush1.bf16.msra.mxu0 0
  %1505 = vmatprep.subr.bf16.mxu0 0
  %1506 = vmatpush1.bf16.msra.mxu0 0
  %1507 = vmatprep.subr.bf16.mxu0 0
  %1508 = vmatpush1.bf16.msra.mxu0 0
  %1509 = vmatprep.subr.bf16.mxu0 0
  %1510 = vmatpush1.bf16.msra.mxu0 0
  %1511 = vmatprep.subr.bf16.mxu0 0
  %1512 = vmatpush1.bf16.msra.mxu0 0
  %1513 = vmatprep.subr.bf16.mxu0 0
  %1514 = vmatpush1.bf16.msra.mxu0 0
  %1515 = vmatprep.subr.bf16.mxu0 0
  %1516 = vmatpush1.bf16.msra.mxu0 0
  %1517 = vmatprep.subr.bf16.mxu0 0
  %1518 = vmatpush1.bf16.msra.mxu0 0
  %1519 = vmatprep.subr.bf16.mxu0 0
  %1520 = vmatpush1.bf16.msra.mxu0 0
  %1521 = vmatprep.subr.bf16.mxu0 0
  %1522 = vmatpush1.bf16.msra.mxu0 0
  %1523 = vmatprep.subr.bf16.mxu0 0
  %1524 = vmatpush1.bf16.msra.mxu0 0
  %1525 = vmatprep.mubr.bf16.mxu0 0
  %1526 = vmatmul.mubr.bf16.gmra.mrb[0].mxu0 %v1491
  %v1527 = vpop.f32.mrb[0].mxu0
  %v1528 = vadd.f32 %v1422, %v1527
  %v1529 = vpop.f32.mrb[0].mxu0
  %v1530 = vpop.f32.mrb[0].mxu0
  %v1531 = vadd.f32 %v1422, %v1530
  %v1532 = vpop.f32.mrb[0].mxu0
  %1533 = vdwg.mxu0
  %v1534 = vpack.c.bf16 %v1531, %v1528
  %v1535 = vld [vmem:[%s10] sm:$0xf]
  %v1536 = vld [vmem:[%s10 + $0x4] sm:$0xf]
  %v1537 = vld [vmem:[%s10 + $0x8] sm:$0xf]
  %v1538 = vld [vmem:[%s10 + $0xc] sm:$0xf]
  %v1539 = vld [vmem:[%s11] sm:$0x1]
  %v1541 = vlaneseq
  %v1542 = vshrl.u32 %v1541, 7
  %v1543 = vsub.s32 0, %v1542
  %v1544 = vrot.slane %v1539, %v1543
  %v1550 = vunpack.c.l.b16 %v1535
  %v1551 = vunpack.c.l.b16 %v1536
  %v1552 = vunpack.c.l.b16 %v1537
  %v1553 = vunpack.c.l.b16 %v1538
  %v1554 = vpack.c.b16 %v1551, %v1550
  %v1555 = vpack.c.b16 %v1553, %v1552
  %v1559 = vsel %vm94, %v1534, 0
  %1561 = vmatprep.subr.bf16.mxu0 0
  %1562 = vmatpush1.bf16.msra.mxu0 %v1554
  %1563 = vmatprep.subr.bf16.mxu0 0
  %1564 = vmatpush1.bf16.msra.mxu0 %v1555
  %1565 = vmatprep.subr.bf16.mxu0 0
  %1566 = vmatpush1.bf16.msra.mxu0 0
  %1567 = vmatprep.subr.bf16.mxu0 0
  %1568 = vmatpush1.bf16.msra.mxu0 0
  %1569 = vmatprep.subr.bf16.mxu0 0
  %1570 = vmatpush1.bf16.msra.mxu0 0
  %1571 = vmatprep.subr.bf16.mxu0 0
  %1572 = vmatpush1.bf16.msra.mxu0 0
  %1573 = vmatprep.subr.bf16.mxu0 0
  %1574 = vmatpush1.bf16.msra.mxu0 0
  %1575 = vmatprep.subr.bf16.mxu0 0
  %1576 = vmatpush1.bf16.msra.mxu0 0
  %1577 = vmatprep.subr.bf16.mxu0 0
  %1578 = vmatpush1.bf16.msra.mxu0 0
  %1579 = vmatprep.subr.bf16.mxu0 0
  %1580 = vmatpush1.bf16.msra.mxu0 0
  %1581 = vmatprep.subr.bf16.mxu0 0
  %1582 = vmatpush1.bf16.msra.mxu0 0
  %1583 = vmatprep.subr.bf16.mxu0 0
  %1584 = vmatpush1.bf16.msra.mxu0 0
  %1585 = vmatprep.subr.bf16.mxu0 0
  %1586 = vmatpush1.bf16.msra.mxu0 0
  %1587 = vmatprep.subr.bf16.mxu0 0
  %1588 = vmatpush1.bf16.msra.mxu0 0
  %1589 = vmatprep.subr.bf16.mxu0 0
  %1590 = vmatpush1.bf16.msra.mxu0 0
  %1591 = vmatprep.subr.bf16.mxu0 0
  %1592 = vmatpush1.bf16.msra.mxu0 0
  %1593 = vmatprep.mubr.bf16.mxu0 0
  %1594 = vmatmul.mubr.bf16.gmra.mrb[0].mxu0 %v1559
  %v1595 = vpop.f32.mrb[0].mxu0
  %v1596 = vadd.f32 %v1544, %v1595
  %v1597 = vpop.f32.mrb[0].mxu0
  %v1598 = vpop.f32.mrb[0].mxu0
  %v1599 = vadd.f32 %v1544, %v1598
  %v1600 = vpop.f32.mrb[0].mxu0
  %1601 = vdwg.mxu0
  %vm1602 = vcmask 64512
  %1603 = vst.msk [vmem:[%s14] sm:$0xff] %vm1602, %v1596
  %1604 = vst.msk [vmem:[%s14 + $0x8] sm:$0xff] %vm1602, %v1599
  // Predicated region
  $region58: #{tpu_custom_call.1} parent=0 // pred_check
    _
  $region59: #{tpu_custom_call.1} parent=0 // pred_check_branch
    %1606 = sbr.rel (0) target = $region61
  $region60: #{tpu_custom_call.1} parent=0 // pred_region
    _
  $region61: #{tpu_custom_call.1} parent=0 // pred_fallthru
    _
  // Predicated region
  $region62: #{tpu_custom_call.1} parent=0 // pred_check
    _
  $region63: #{tpu_custom_call.1} parent=0 // pred_check_branch
    %1608 = sbr.rel (0) target = $region65
  $region64: #{tpu_custom_call.1} parent=0 // pred_region
    _
  $region65: #{tpu_custom_call.1} parent=0 // pred_fallthru
    _

</llo_original>
